<compile_context>
chip_gen: v5e
topology: v5e:2x2
jax: 0.10.0
libtpu: 0.0.40
codegen_flags: <defaults>
</compile_context>

<pallas_src>
import functools
import math

import jax
import jax.numpy as jnp
from jax import lax
from jax.experimental import pallas as pl
from jax.experimental.pallas import tpu as pltpu


LANE = 128  # lane-dense padding for the classifier output


# ----------------------------------------------------------------------------
# Fused kernel: one grid step == TB batch elements
# ----------------------------------------------------------------------------
def _fused_bert_classifier_kernel(
    vl_ref,                                   # scalar prefetch: (B,) int32 (SMEM)
    emb_ref,                                  # (TB, S, H) bf16
    ln_emb_g_ref, ln_emb_b_ref,               # (1, H) f32
    wq_ref, bq_ref, wk_ref, bk_ref,           # (H, H) bf16 / (1, H) f32
    wv_ref, bv_ref, wo_ref, bo_ref,
    ln1_g_ref, ln1_b_ref,
    w1_ref, b1_ref,                           # (H, F) bf16 / (1, F) f32
    w2_ref, b2_ref,                           # (F, H) bf16 / (1, H) f32
    ln2_g_ref, ln2_b_ref,
    wp_ref, bp_ref,                           # pooler
    wc_ref, bc_ref,                           # classifier, padded to LANE
    out_ref,                                  # (1, TB, LANE) f32
    *, num_heads, dr_rate, seed, training, eps=1e-12,
):
    b0 = pl.program_id(0)
    TB, S, H = emb_ref.shape
    dh = H // num_heads
    scale = 1.0 / math.sqrt(dh)

    def ln(x, g_ref, be_ref):
        mu = jnp.mean(x, axis=-1, keepdims=True)
        var = jnp.mean(jnp.square(x - mu), axis=-1, keepdims=True)
        return (x - mu) * lax.rsqrt(var + eps) * g_ref[...] + be_ref[...]

    def dense(x, w_ref, b_ref):
        # bf16 MXU operands, f32 accumulation; bias epilogue stays f32.
        y = jnp.dot(x.astype(jnp.bfloat16), w_ref[...],
                    preferred_element_type=jnp.float32)
        return y + b_ref[...]

    # --- attention mask (gen_attention_mask) as an additive key bias ----------
    # vl scalars come from SMEM; vectorized over the TB rows of this block.
    rowi = lax.broadcasted_iota(jnp.int32, (TB, S), 0)
    pos = lax.broadcasted_iota(jnp.int32, (TB, S), 1)
    vl_mat = jnp.zeros((TB, S), jnp.int32)
    for i in range(TB):                          # TB is small & static
        vl_mat = jnp.where(rowi == i, vl_ref[b0 * TB + i], vl_mat)
    bias = jnp.where(pos < vl_mat, 0.0, -1e9)                      # (TB, S) f32
    # hoisted ONCE (JAX does not CSE broadcast_in_dim inside the head loop)
    bias3 = jnp.broadcast_to(bias.reshape(TB, 1, S), (TB, S, S))   # (TB, S, S)

    # --- embedding layernorm (activations flattened to (TB*S, H)) -------------
    x = emb_ref[...].astype(jnp.float32).reshape(TB * S, H)
    h = ln(x, ln_emb_g_ref, ln_emb_b_ref)

    # --- self attention --------------------------------------------------------
    q = dense(h, wq_ref, bq_ref).reshape(TB, S, H)
    k = dense(h, wk_ref, bk_ref).reshape(TB, S, H)
    v = dense(h, wv_ref, bv_ref).reshape(TB, S, H)

    ctx_heads = []
    for hd in range(num_heads):
        sl = slice(hd * dh, (hd + 1) * dh)
        qh = q[:, :, sl].astype(jnp.bfloat16)                      # (TB, S, dh)
        kh = k[:, :, sl].astype(jnp.bfloat16)
        vh = v[:, :, sl].astype(jnp.bfloat16)
        s = jnp.einsum('bqd,bkd->bqk', qh, kh,
                       preferred_element_type=jnp.float32) * scale
        s = s + bias3
        s = s - jnp.max(s, axis=-1, keepdims=True)
        p = jnp.exp(s)
        p = p * pl.reciprocal(jnp.sum(p, axis=-1, keepdims=True), approx=True)
        ctx_heads.append(jnp.einsum('bqk,bkd->bqd', p.astype(jnp.bfloat16), vh,
                                    preferred_element_type=jnp.float32))
    # single, hoisted output projection (one wide (TB*S,H)@(H,H) MXU op)
    ctx = jnp.concatenate(ctx_heads, axis=-1).reshape(TB * S, H)
    attn_out = dense(ctx, wo_ref, bo_ref)
    h1 = ln(h + attn_out, ln1_g_ref, ln1_b_ref)

    # --- feed forward (tanh-approx gelu, f32 elementwise) ---------------------
    ff = dense(h1, w1_ref, b1_ref)
    gc = math.sqrt(2.0 / math.pi)
    ff = 0.5 * ff * (1.0 + jnp.tanh(gc * (ff + 0.044715 * ff * ff * ff)))
    ff = dense(ff, w2_ref, b2_ref)
    h2 = ln(h1 + ff, ln2_g_ref, ln2_b_ref)                         # (TB*S, H)

    # --- pooler: tanh(W_p @ h[:, 0] + b_p) on the TB CLS rows -----------------
    cls = h2.reshape(TB, S, H)[:, 0:1, :].reshape(TB, H)
    pooled = jnp.tanh(dense(cls, wp_ref, bp_ref))                  # (TB, H)

    # --- dropout (train-mode only), fused epilogue with portable int-hash PRNG
    # (pltpu.prng_* has no interpret-mode lowering; this hash runs everywhere.)
    if dr_rate and training:
        r = lax.broadcasted_iota(jnp.int32, (TB, H), 0) + b0 * TB
        cidx = lax.broadcasted_iota(jnp.int32, (TB, H), 1)
        z = r * jnp.int32(7919) + cidx + jnp.int32((seed * 1000003) % (2**31 - 1))
        z = (z ^ (z >> 16)) * jnp.int32(0x45D9F3B)
        z = (z ^ (z >> 16)) * jnp.int32(0x45D9F3B)
        z = z ^ (z >> 16)
        u = (z & jnp.int32(0x7FFFFF)).astype(jnp.float32) * (1.0 / float(1 << 23))
        keep = (u >= dr_rate).astype(jnp.float32)
        pooled = pooled * keep * (1.0 / (1.0 - dr_rate))
    # TODO(synk): reference module would NameError when dr_rate is None; we pass pooler through.

    # --- classifier (lane-dense padded output; sliced in the wrapper) ---------
    logits = dense(pooled, wc_ref, bc_ref)                         # (TB, LANE)
    out_ref[...] = logits.reshape(out_ref.shape)


# ----------------------------------------------------------------------------
# Synthetic mini-BERT parameters + wrapper
# ----------------------------------------------------------------------------
def init_params(key, vocab=100, H=32, ffn=128, S=8, num_classes=7):
    keys = jax.random.split(key, 12)
    init = lambda k, shape: jax.random.normal(k, shape, jnp.float32) * 0.02
    return dict(
        word_emb=init(keys[0], (vocab, H)),
        pos_emb=init(keys[1], (S, H)),
        seg_emb=init(keys[2], (2, H)),
        ln_emb_g=jnp.ones((1, H), jnp.float32), ln_emb_b=jnp.zeros((1, H), jnp.float32),
        wq=init(keys[3], (H, H)), bq=jnp.zeros((H,), jnp.float32),
        wk=init(keys[4], (H, H)), bk=jnp.zeros((H,), jnp.float32),
        wv=init(keys[5], (H, H)), bv=jnp.zeros((H,), jnp.float32),
        wo=init(keys[6], (H, H)), bo=jnp.zeros((H,), jnp.float32),
        ln1_g=jnp.ones((1, H), jnp.float32), ln1_b=jnp.zeros((1, H), jnp.float32),
        w1=init(keys[7], (H, ffn)), b1=jnp.zeros((ffn,), jnp.float32),
        w2=init(keys[8], (ffn, H)), b2=jnp.zeros((H,), jnp.float32),
        ln2_g=jnp.ones((1, H), jnp.float32), ln2_b=jnp.zeros((1, H), jnp.float32),
        wp=init(keys[9], (H, H)), bp=jnp.zeros((H,), jnp.float32),      # pooler
        wc=init(keys[10], (H, num_classes)), bc=jnp.zeros((num_classes,), jnp.float32),
    )


def bert_classifier_forward(params, token_ids, valid_length, segment_ids,
                            *, num_heads=2, dr_rate=0.1, dropout_seed=0,
                            training=True, tb=4):
    B, S = token_ids.shape
    H = params["word_emb"].shape[1]
    num_classes = params["wc"].shape[1]

    TB = min(tb, B)
    assert B % TB == 0, "batch must be divisible by the row-block size TB"
    # keep >=2 grid steps when possible so ("parallel",) can split over v7x's 2 TCs

    # --- embedding gathers stay in XLA (glue); streamed to the kernel as bf16 ---
    # TODO(synk): move the gather in-kernel (pl.Element row gather) at production shapes.
    emb = (params["word_emb"][token_ids]
           + params["pos_emb"][None, :, :]
           + params["seg_emb"][segment_ids.astype(jnp.int32)]).astype(jnp.bfloat16)

    bf16 = jnp.bfloat16
    row = lambda v: v.reshape(1, -1).astype(jnp.float32)

    # classifier weights padded to a lane-dense (H, 128) / (1, 128)
    wc_pad = jnp.zeros((H, LANE), jnp.float32).at[:, :num_classes].set(params["wc"])
    bc_pad = jnp.zeros((1, LANE), jnp.float32).at[:, :num_classes].set(params["bc"][None, :])

    weights = [
        row(params["ln_emb_g"]), row(params["ln_emb_b"]),
        params["wq"].astype(bf16), row(params["bq"]),
        params["wk"].astype(bf16), row(params["bk"]),
        params["wv"].astype(bf16), row(params["bv"]),
        params["wo"].astype(bf16), row(params["bo"]),
        row(params["ln1_g"]), row(params["ln1_b"]),
        params["w1"].astype(bf16), row(params["b1"]),
        params["w2"].astype(bf16), row(params["b2"]),
        row(params["ln2_g"]), row(params["ln2_b"]),
        params["wp"].astype(bf16), row(params["bp"]),
        wc_pad.astype(bf16), bc_pad,
    ]

    def full_spec(a):
        # whole-array block, constant block index (never re-fetched across steps),
        # single-buffered to halve weight VMEM footprint.
        nd = a.ndim
        return pl.BlockSpec(a.shape, lambda b, vl, nd=nd: (0,) * nd,
                            pipeline_mode=pl.Buffered(1))

    grid_spec = pltpu.PrefetchScalarGridSpec(
        num_scalar_prefetch=1,
        grid=(B // TB,),
        in_specs=([pl.BlockSpec((TB, S, H), lambda b, vl: (b, 0, 0))]
                  + [full_spec(w) for w in weights]),
        out_specs=pl.BlockSpec((1, TB, LANE), lambda b, vl: (b, 0, 0)),
    )

    kernel = functools.partial(
        _fused_bert_classifier_kernel,
        num_heads=num_heads, dr_rate=dr_rate, seed=dropout_seed, training=training)

    out = pl.pallas_call(
        kernel,
        grid_spec=grid_spec,
        out_shape=jax.ShapeDtypeStruct((B // TB, TB, LANE), jnp.float32),
        compiler_params=pltpu.CompilerParams(
            dimension_semantics=("parallel",),        # shards batch blocks over v7x's 2 TCs
            vmem_limit_bytes=32 * 1024 * 1024),       # explicit; re-derive per chip at prod shapes
    )(valid_length.astype(jnp.int32), emb, *weights)

    return out.reshape(B, LANE)[:, :num_classes]


if __name__ == "__main__":
    B, S, H, num_heads, num_classes, vocab = 8, 8, 32, 2, 7, 100

    key = jax.random.PRNGKey(0)
    k_tok, k_param = jax.random.split(key, 2)
    token_ids = jax.random.randint(k_tok, (B, S), 0, vocab, dtype=jnp.int32)
    segment_ids = jnp.zeros((B, S), dtype=jnp.int32)
    valid_length = jnp.array([5, 8, 3, 8, 6, 2, 7, 4], dtype=jnp.int32)

    params = init_params(k_param, vocab=vocab, H=H, ffn=4 * H, S=S,
                         num_classes=num_classes)

    logits = bert_classifier_forward(params, token_ids, valid_length, segment_ids,
                                     num_heads=num_heads, dr_rate=0.1,
                                     dropout_seed=0, training=True, tb=4)
    logits = jax.block_until_ready(logits)

    assert logits.shape == (B, num_classes)
    assert bool(jnp.all(jnp.isfinite(logits)))
    print("KERNEL_OK")
</pallas_src>

<mosaic_0001>
module attributes {stable_mosaic.version = 11 : i64} {
  func.func @_fused_bert_classifier_kernel(%arg0: i32, %arg1: memref<8xi32, #tpu.memory_space<smem>>, %arg2: memref<4x8x32xbf16, #tpu.memory_space<vmem>>, %arg3: memref<1x32xf32, #tpu.memory_space<vmem>>, %arg4: memref<1x32xf32, #tpu.memory_space<vmem>>, %arg5: memref<32x32xbf16, #tpu.memory_space<vmem>>, %arg6: memref<1x32xf32, #tpu.memory_space<vmem>>, %arg7: memref<32x32xbf16, #tpu.memory_space<vmem>>, %arg8: memref<1x32xf32, #tpu.memory_space<vmem>>, %arg9: memref<32x32xbf16, #tpu.memory_space<vmem>>, %arg10: memref<1x32xf32, #tpu.memory_space<vmem>>, %arg11: memref<32x32xbf16, #tpu.memory_space<vmem>>, %arg12: memref<1x32xf32, #tpu.memory_space<vmem>>, %arg13: memref<1x32xf32, #tpu.memory_space<vmem>>, %arg14: memref<1x32xf32, #tpu.memory_space<vmem>>, %arg15: memref<32x128xbf16, #tpu.memory_space<vmem>>, %arg16: memref<1x128xf32, #tpu.memory_space<vmem>>, %arg17: memref<128x32xbf16, #tpu.memory_space<vmem>>, %arg18: memref<1x32xf32, #tpu.memory_space<vmem>>, %arg19: memref<1x32xf32, #tpu.memory_space<vmem>>, %arg20: memref<1x32xf32, #tpu.memory_space<vmem>>, %arg21: memref<32x32xbf16, #tpu.memory_space<vmem>>, %arg22: memref<1x32xf32, #tpu.memory_space<vmem>>, %arg23: memref<32x128xbf16, #tpu.memory_space<vmem>>, %arg24: memref<1x128xf32, #tpu.memory_space<vmem>>, %arg25: memref<1x4x128xf32, #tpu.memory_space<vmem>>) attributes {dimension_semantics = [#tpu.dimension_semantics<parallel>], iteration_bounds = array<i64: 2>, scalar_prefetch = 1 : i64, scratch_operands = 0 : i64, tpu.core_type = #tpu.core_type<tc>, window_params = [{transform_indices = @transform_0, window_bounds = array<i64: 4, 8, 32>}, {pipeline_mode = #tpu.pipeline_mode<synchronous>, transform_indices = @transform_1, window_bounds = array<i64: 1, 32>}, {pipeline_mode = #tpu.pipeline_mode<synchronous>, transform_indices = @transform_2, window_bounds = array<i64: 1, 32>}, {pipeline_mode = #tpu.pipeline_mode<synchronous>, transform_indices = @transform_3, window_bounds = array<i64: 32, 32>}, {pipeline_mode = #tpu.pipeline_mode<synchronous>, transform_indices = @transform_4, window_bounds = array<i64: 1, 32>}, {pipeline_mode = #tpu.pipeline_mode<synchronous>, transform_indices = @transform_5, window_bounds = array<i64: 32, 32>}, {pipeline_mode = #tpu.pipeline_mode<synchronous>, transform_indices = @transform_6, window_bounds = array<i64: 1, 32>}, {pipeline_mode = #tpu.pipeline_mode<synchronous>, transform_indices = @transform_7, window_bounds = array<i64: 32, 32>}, {pipeline_mode = #tpu.pipeline_mode<synchronous>, transform_indices = @transform_8, window_bounds = array<i64: 1, 32>}, {pipeline_mode = #tpu.pipeline_mode<synchronous>, transform_indices = @transform_9, window_bounds = array<i64: 32, 32>}, {pipeline_mode = #tpu.pipeline_mode<synchronous>, transform_indices = @transform_10, window_bounds = array<i64: 1, 32>}, {pipeline_mode = #tpu.pipeline_mode<synchronous>, transform_indices = @transform_11, window_bounds = array<i64: 1, 32>}, {pipeline_mode = #tpu.pipeline_mode<synchronous>, transform_indices = @transform_12, window_bounds = array<i64: 1, 32>}, {pipeline_mode = #tpu.pipeline_mode<synchronous>, transform_indices = @transform_13, window_bounds = array<i64: 32, 128>}, {pipeline_mode = #tpu.pipeline_mode<synchronous>, transform_indices = @transform_14, window_bounds = array<i64: 1, 128>}, {pipeline_mode = #tpu.pipeline_mode<synchronous>, transform_indices = @transform_15, window_bounds = array<i64: 128, 32>}, {pipeline_mode = #tpu.pipeline_mode<synchronous>, transform_indices = @transform_16, window_bounds = array<i64: 1, 32>}, {pipeline_mode = #tpu.pipeline_mode<synchronous>, transform_indices = @transform_17, window_bounds = array<i64: 1, 32>}, {pipeline_mode = #tpu.pipeline_mode<synchronous>, transform_indices = @transform_18, window_bounds = array<i64: 1, 32>}, {pipeline_mode = #tpu.pipeline_mode<synchronous>, transform_indices = @transform_19, window_bounds = array<i64: 32, 32>}, {pipeline_mode = #tpu.pipeline_mode<synchronous>, transform_indices = @transform_20, window_bounds = array<i64: 1, 32>}, {pipeline_mode = #tpu.pipeline_mode<synchronous>, transform_indices = @transform_21, window_bounds = array<i64: 32, 128>}, {pipeline_mode = #tpu.pipeline_mode<synchronous>, transform_indices = @transform_22, window_bounds = array<i64: 1, 128>}, {transform_indices = @transform_23, window_bounds = array<i64: 1, 4, 128>}]} {
    %0 = tpu.iota {dimensions = array<i32: 0>} : vector<4x8xi32>
    %1 = tpu.iota {dimensions = array<i32: 1>} : vector<4x8xi32>
    %c0_i32 = arith.constant 0 : i32
    %2 = vector.broadcast %c0_i32 : i32 to vector<4x8xi32>
    %c0_i32_0 = arith.constant 0 : i32
    %3 = vector.broadcast %c0_i32_0 : i32 to vector<4x8xi32>
    %4 = arith.cmpi eq, %0, %3 : vector<4x8xi32>
    %c4_i32 = arith.constant 4 : i32
    %5 = arith.muli %arg0, %c4_i32 : i32
    %c0_i32_1 = arith.constant 0 : i32
    %6 = arith.addi %5, %c0_i32_1 : i32
    %7 = arith.index_cast %6 : i32 to index
    %8 = memref.load %arg1[%7] : memref<8xi32, #tpu.memory_space<smem>>
    %9 = vector.broadcast %8 : i32 to vector<4x8xi32>
    %10 = arith.select %4, %9, %2 : vector<4x8xi1>, vector<4x8xi32>
    %c1_i32 = arith.constant 1 : i32
    %11 = vector.broadcast %c1_i32 : i32 to vector<4x8xi32>
    %12 = arith.cmpi eq, %0, %11 : vector<4x8xi32>
    %c4_i32_2 = arith.constant 4 : i32
    %13 = arith.muli %arg0, %c4_i32_2 : i32
    %c1_i32_3 = arith.constant 1 : i32
    %14 = arith.addi %13, %c1_i32_3 : i32
    %15 = arith.index_cast %14 : i32 to index
    %16 = memref.load %arg1[%15] : memref<8xi32, #tpu.memory_space<smem>>
    %17 = vector.broadcast %16 : i32 to vector<4x8xi32>
    %18 = arith.select %12, %17, %10 : vector<4x8xi1>, vector<4x8xi32>
    %c2_i32 = arith.constant 2 : i32
    %19 = vector.broadcast %c2_i32 : i32 to vector<4x8xi32>
    %20 = arith.cmpi eq, %0, %19 : vector<4x8xi32>
    %c4_i32_4 = arith.constant 4 : i32
    %21 = arith.muli %arg0, %c4_i32_4 : i32
    %c2_i32_5 = arith.constant 2 : i32
    %22 = arith.addi %21, %c2_i32_5 : i32
    %23 = arith.index_cast %22 : i32 to index
    %24 = memref.load %arg1[%23] : memref<8xi32, #tpu.memory_space<smem>>
    %25 = vector.broadcast %24 : i32 to vector<4x8xi32>
    %26 = arith.select %20, %25, %18 : vector<4x8xi1>, vector<4x8xi32>
    %c3_i32 = arith.constant 3 : i32
    %27 = vector.broadcast %c3_i32 : i32 to vector<4x8xi32>
    %28 = arith.cmpi eq, %0, %27 : vector<4x8xi32>
    %c4_i32_6 = arith.constant 4 : i32
    %29 = arith.muli %arg0, %c4_i32_6 : i32
    %c3_i32_7 = arith.constant 3 : i32
    %30 = arith.addi %29, %c3_i32_7 : i32
    %31 = arith.index_cast %30 : i32 to index
    %32 = memref.load %arg1[%31] : memref<8xi32, #tpu.memory_space<smem>>
    %33 = vector.broadcast %32 : i32 to vector<4x8xi32>
    %34 = arith.select %28, %33, %26 : vector<4x8xi1>, vector<4x8xi32>
    %35 = arith.cmpi slt, %1, %34 : vector<4x8xi32>
    %cst = arith.constant 0.000000e+00 : f32
    %cst_8 = arith.constant -1.000000e+09 : f32
    %36 = vector.broadcast %cst : f32 to vector<4x8xf32>
    %37 = vector.broadcast %cst_8 : f32 to vector<4x8xf32>
    %38 = arith.select %35, %36, %37 : vector<4x8xi1>, vector<4x8xf32>
    %39 = vector.shape_cast %38 : vector<4x8xf32> to vector<4x1x8xf32>
    %40 = vector.shape_cast %39 : vector<4x1x8xf32> to vector<4x1x8xf32>
    %41 = vector.broadcast %40 : vector<4x1x8xf32> to vector<4x8x8xf32>
    %c0 = arith.constant 0 : index
    %c0_9 = arith.constant 0 : index
    %c0_10 = arith.constant 0 : index
    %42 = vector.load %arg2[%c0, %c0_9, %c0_10] : memref<4x8x32xbf16, #tpu.memory_space<vmem>>, vector<4x8x32xbf16>
    %43 = arith.extf %42 : vector<4x8x32xbf16> to vector<4x8x32xf32>
    %44 = vector.shape_cast %43 : vector<4x8x32xf32> to vector<32x32xf32>
    %cst_11 = arith.constant dense<0.000000e+00> : vector<32xf32>
    %45 = vector.multi_reduction <add>, %44, %cst_11 [1] : vector<32x32xf32> to vector<32xf32>
    %46 = vector.shape_cast %45 : vector<32xf32> to vector<32x1xf32>
    %cst_12 = arith.constant 3.200000e+01 : f32
    %47 = vector.broadcast %cst_12 : f32 to vector<32x1xf32>
    %48 = arith.divf %46, %47 : vector<32x1xf32>
    %49 = vector.broadcast %48 : vector<32x1xf32> to vector<32x32xf32>
    %50 = arith.subf %44, %49 : vector<32x32xf32>
    %51 = arith.mulf %50, %50 : vector<32x32xf32>
    %cst_13 = arith.constant dense<0.000000e+00> : vector<32xf32>
    %52 = vector.multi_reduction <add>, %51, %cst_13 [1] : vector<32x32xf32> to vector<32xf32>
    %53 = vector.shape_cast %52 : vector<32xf32> to vector<32x1xf32>
    %cst_14 = arith.constant 3.200000e+01 : f32
    %54 = vector.broadcast %cst_14 : f32 to vector<32x1xf32>
    %55 = arith.divf %53, %54 : vector<32x1xf32>
    %56 = vector.broadcast %48 : vector<32x1xf32> to vector<32x32xf32>
    %57 = arith.subf %44, %56 : vector<32x32xf32>
    %cst_15 = arith.constant 9.99999996E-13 : f32
    %58 = vector.broadcast %cst_15 : f32 to vector<32x1xf32>
    %59 = arith.addf %55, %58 : vector<32x1xf32>
    %60 = math.rsqrt %59 : vector<32x1xf32>
    %61 = vector.broadcast %60 : vector<32x1xf32> to vector<32x32xf32>
    %62 = arith.mulf %57, %61 : vector<32x32xf32>
    %c0_16 = arith.constant 0 : index
    %c0_17 = arith.constant 0 : index
    %63 = vector.load %arg3[%c0_16, %c0_17] : memref<1x32xf32, #tpu.memory_space<vmem>>, vector<1x32xf32>
    %64 = vector.broadcast %63 : vector<1x32xf32> to vector<32x32xf32>
    %65 = arith.mulf %62, %64 : vector<32x32xf32>
    %c0_18 = arith.constant 0 : index
    %c0_19 = arith.constant 0 : index
    %66 = vector.load %arg4[%c0_18, %c0_19] : memref<1x32xf32, #tpu.memory_space<vmem>>, vector<1x32xf32>
    %67 = vector.broadcast %66 : vector<1x32xf32> to vector<32x32xf32>
    %68 = arith.addf %65, %67 : vector<32x32xf32>
    %69 = arith.truncf %68 : vector<32x32xf32> to vector<32x32xbf16>
    %c0_20 = arith.constant 0 : index
    %c0_21 = arith.constant 0 : index
    %70 = vector.load %arg5[%c0_20, %c0_21] : memref<32x32xbf16, #tpu.memory_space<vmem>>, vector<32x32xbf16>
    %cst_22 = arith.constant dense<0.000000e+00> : vector<32x32xf32>
    %71 = tpu.matmul %69, %70, %cst_22 {dimension_numbers = #tpu.dot_dimension_numbers<[1], [0], [0], [1], [0, 0, 1, 1], [], []>} : vector<32x32xbf16>, vector<32x32xbf16>, vector<32x32xf32> -> vector<32x32xf32>
    %c0_23 = arith.constant 0 : index
    %c0_24 = arith.constant 0 : index
    %72 = vector.load %arg6[%c0_23, %c0_24] : memref<1x32xf32, #tpu.memory_space<vmem>>, vector<1x32xf32>
    %73 = vector.broadcast %72 : vector<1x32xf32> to vector<32x32xf32>
    %74 = arith.addf %71, %73 : vector<32x32xf32>
    %75 = vector.shape_cast %74 : vector<32x32xf32> to vector<4x8x32xf32>
    %76 = arith.truncf %68 : vector<32x32xf32> to vector<32x32xbf16>
    %c0_25 = arith.constant 0 : index
    %c0_26 = arith.constant 0 : index
    %77 = vector.load %arg7[%c0_25, %c0_26] : memref<32x32xbf16, #tpu.memory_space<vmem>>, vector<32x32xbf16>
    %cst_27 = arith.constant dense<0.000000e+00> : vector<32x32xf32>
    %78 = tpu.matmul %76, %77, %cst_27 {dimension_numbers = #tpu.dot_dimension_numbers<[1], [0], [0], [1], [0, 0, 1, 1], [], []>} : vector<32x32xbf16>, vector<32x32xbf16>, vector<32x32xf32> -> vector<32x32xf32>
    %c0_28 = arith.constant 0 : index
    %c0_29 = arith.constant 0 : index
    %79 = vector.load %arg8[%c0_28, %c0_29] : memref<1x32xf32, #tpu.memory_space<vmem>>, vector<1x32xf32>
    %80 = vector.broadcast %79 : vector<1x32xf32> to vector<32x32xf32>
    %81 = arith.addf %78, %80 : vector<32x32xf32>
    %82 = vector.shape_cast %81 : vector<32x32xf32> to vector<4x8x32xf32>
    %83 = arith.truncf %68 : vector<32x32xf32> to vector<32x32xbf16>
    %c0_30 = arith.constant 0 : index
    %c0_31 = arith.constant 0 : index
    %84 = vector.load %arg9[%c0_30, %c0_31] : memref<32x32xbf16, #tpu.memory_space<vmem>>, vector<32x32xbf16>
    %cst_32 = arith.constant dense<0.000000e+00> : vector<32x32xf32>
    %85 = tpu.matmul %83, %84, %cst_32 {dimension_numbers = #tpu.dot_dimension_numbers<[1], [0], [0], [1], [0, 0, 1, 1], [], []>} : vector<32x32xbf16>, vector<32x32xbf16>, vector<32x32xf32> -> vector<32x32xf32>
    %c0_33 = arith.constant 0 : index
    %c0_34 = arith.constant 0 : index
    %86 = vector.load %arg10[%c0_33, %c0_34] : memref<1x32xf32, #tpu.memory_space<vmem>>, vector<1x32xf32>
    %87 = vector.broadcast %86 : vector<1x32xf32> to vector<32x32xf32>
    %88 = arith.addf %85, %87 : vector<32x32xf32>
    %89 = vector.shape_cast %88 : vector<32x32xf32> to vector<4x8x32xf32>
    %90 = vector.extract_strided_slice %75 {offsets = [0, 0, 0], sizes = [4, 8, 16], strides = [1, 1, 1]} : vector<4x8x32xf32> to vector<4x8x16xf32>
    %91 = arith.truncf %90 : vector<4x8x16xf32> to vector<4x8x16xbf16>
    %92 = vector.extract_strided_slice %82 {offsets = [0, 0, 0], sizes = [4, 8, 16], strides = [1, 1, 1]} : vector<4x8x32xf32> to vector<4x8x16xf32>
    %93 = arith.truncf %92 : vector<4x8x16xf32> to vector<4x8x16xbf16>
    %94 = vector.extract_strided_slice %89 {offsets = [0, 0, 0], sizes = [4, 8, 16], strides = [1, 1, 1]} : vector<4x8x32xf32> to vector<4x8x16xf32>
    %95 = arith.truncf %94 : vector<4x8x16xf32> to vector<4x8x16xbf16>
    "tpu.trace_start"() <{level = 10 : i32, message = "bqd,bkd->bqk"}> : () -> ()
    %cst_35 = arith.constant dense<0.000000e+00> : vector<4x8x8xf32>
    %96 = tpu.matmul %91, %93, %cst_35 {dimension_numbers = #tpu.dot_dimension_numbers<[2], [2], [1], [1], [0, 0, 0, 1, 1, 1], [0], [0]>} : vector<4x8x16xbf16>, vector<4x8x16xbf16>, vector<4x8x8xf32> -> vector<4x8x8xf32>
    "tpu.trace_stop"() : () -> ()
    %cst_36 = arith.constant 2.500000e-01 : f32
    %97 = vector.broadcast %cst_36 : f32 to vector<4x8x8xf32>
    %98 = arith.mulf %96, %97 : vector<4x8x8xf32>
    %99 = arith.addf %98, %41 : vector<4x8x8xf32>
    %cst_37 = arith.constant dense<0xFF800000> : vector<4x8xf32>
    %100 = vector.multi_reduction <maximumf>, %99, %cst_37 [2] : vector<4x8x8xf32> to vector<4x8xf32>
    %101 = vector.shape_cast %100 : vector<4x8xf32> to vector<4x8x1xf32>
    %102 = vector.broadcast %101 : vector<4x8x1xf32> to vector<4x8x8xf32>
    %103 = arith.subf %99, %102 : vector<4x8x8xf32>
    %104 = math.exp %103 : vector<4x8x8xf32>
    %cst_38 = arith.constant dense<0.000000e+00> : vector<4x8xf32>
    %105 = vector.multi_reduction <add>, %104, %cst_38 [2] : vector<4x8x8xf32> to vector<4x8xf32>
    %106 = vector.shape_cast %105 : vector<4x8xf32> to vector<4x8x1xf32>
    %107 = tpu.reciprocal %106 {approx = true} : vector<4x8x1xf32> -> vector<4x8x1xf32>
    %108 = vector.broadcast %107 : vector<4x8x1xf32> to vector<4x8x8xf32>
    %109 = arith.mulf %104, %108 : vector<4x8x8xf32>
    %110 = arith.truncf %109 : vector<4x8x8xf32> to vector<4x8x8xbf16>
    "tpu.trace_start"() <{level = 10 : i32, message = "bqk,bkd->bqd"}> : () -> ()
    %cst_39 = arith.constant dense<0.000000e+00> : vector<4x8x16xf32>
    %111 = tpu.matmul %110, %95, %cst_39 {dimension_numbers = #tpu.dot_dimension_numbers<[2], [1], [1], [2], [0, 0, 0, 1, 1, 2], [0], [0]>} : vector<4x8x8xbf16>, vector<4x8x16xbf16>, vector<4x8x16xf32> -> vector<4x8x16xf32>
    "tpu.trace_stop"() : () -> ()
    %112 = vector.extract_strided_slice %75 {offsets = [0, 0, 16], sizes = [4, 8, 16], strides = [1, 1, 1]} : vector<4x8x32xf32> to vector<4x8x16xf32>
    %113 = arith.truncf %112 : vector<4x8x16xf32> to vector<4x8x16xbf16>
    %114 = vector.extract_strided_slice %82 {offsets = [0, 0, 16], sizes = [4, 8, 16], strides = [1, 1, 1]} : vector<4x8x32xf32> to vector<4x8x16xf32>
    %115 = arith.truncf %114 : vector<4x8x16xf32> to vector<4x8x16xbf16>
    %116 = vector.extract_strided_slice %89 {offsets = [0, 0, 16], sizes = [4, 8, 16], strides = [1, 1, 1]} : vector<4x8x32xf32> to vector<4x8x16xf32>
    %117 = arith.truncf %116 : vector<4x8x16xf32> to vector<4x8x16xbf16>
    "tpu.trace_start"() <{level = 10 : i32, message = "bqd,bkd->bqk"}> : () -> ()
    %cst_40 = arith.constant dense<0.000000e+00> : vector<4x8x8xf32>
    %118 = tpu.matmul %113, %115, %cst_40 {dimension_numbers = #tpu.dot_dimension_numbers<[2], [2], [1], [1], [0, 0, 0, 1, 1, 1], [0], [0]>} : vector<4x8x16xbf16>, vector<4x8x16xbf16>, vector<4x8x8xf32> -> vector<4x8x8xf32>
    "tpu.trace_stop"() : () -> ()
    %cst_41 = arith.constant 2.500000e-01 : f32
    %119 = vector.broadcast %cst_41 : f32 to vector<4x8x8xf32>
    %120 = arith.mulf %118, %119 : vector<4x8x8xf32>
    %121 = arith.addf %120, %41 : vector<4x8x8xf32>
    %cst_42 = arith.constant dense<0xFF800000> : vector<4x8xf32>
    %122 = vector.multi_reduction <maximumf>, %121, %cst_42 [2] : vector<4x8x8xf32> to vector<4x8xf32>
    %123 = vector.shape_cast %122 : vector<4x8xf32> to vector<4x8x1xf32>
    %124 = vector.broadcast %123 : vector<4x8x1xf32> to vector<4x8x8xf32>
    %125 = arith.subf %121, %124 : vector<4x8x8xf32>
    %126 = math.exp %125 : vector<4x8x8xf32>
    %cst_43 = arith.constant dense<0.000000e+00> : vector<4x8xf32>
    %127 = vector.multi_reduction <add>, %126, %cst_43 [2] : vector<4x8x8xf32> to vector<4x8xf32>
    %128 = vector.shape_cast %127 : vector<4x8xf32> to vector<4x8x1xf32>
    %129 = tpu.reciprocal %128 {approx = true} : vector<4x8x1xf32> -> vector<4x8x1xf32>
    %130 = vector.broadcast %129 : vector<4x8x1xf32> to vector<4x8x8xf32>
    %131 = arith.mulf %126, %130 : vector<4x8x8xf32>
    %132 = arith.truncf %131 : vector<4x8x8xf32> to vector<4x8x8xbf16>
    "tpu.trace_start"() <{level = 10 : i32, message = "bqk,bkd->bqd"}> : () -> ()
    %cst_44 = arith.constant dense<0.000000e+00> : vector<4x8x16xf32>
    %133 = tpu.matmul %132, %117, %cst_44 {dimension_numbers = #tpu.dot_dimension_numbers<[2], [1], [1], [2], [0, 0, 0, 1, 1, 2], [0], [0]>} : vector<4x8x8xbf16>, vector<4x8x16xbf16>, vector<4x8x16xf32> -> vector<4x8x16xf32>
    "tpu.trace_stop"() : () -> ()
    %134 = tpu.concatenate %111, %133 in 2 : vector<4x8x16xf32>, vector<4x8x16xf32> -> vector<4x8x32xf32>
    %135 = vector.shape_cast %134 : vector<4x8x32xf32> to vector<32x32xf32>
    %136 = arith.truncf %135 : vector<32x32xf32> to vector<32x32xbf16>
    %c0_45 = arith.constant 0 : index
    %c0_46 = arith.constant 0 : index
    %137 = vector.load %arg11[%c0_45, %c0_46] : memref<32x32xbf16, #tpu.memory_space<vmem>>, vector<32x32xbf16>
    %cst_47 = arith.constant dense<0.000000e+00> : vector<32x32xf32>
    %138 = tpu.matmul %136, %137, %cst_47 {dimension_numbers = #tpu.dot_dimension_numbers<[1], [0], [0], [1], [0, 0, 1, 1], [], []>} : vector<32x32xbf16>, vector<32x32xbf16>, vector<32x32xf32> -> vector<32x32xf32>
    %c0_48 = arith.constant 0 : index
    %c0_49 = arith.constant 0 : index
    %139 = vector.load %arg12[%c0_48, %c0_49] : memref<1x32xf32, #tpu.memory_space<vmem>>, vector<1x32xf32>
    %140 = vector.broadcast %139 : vector<1x32xf32> to vector<32x32xf32>
    %141 = arith.addf %138, %140 : vector<32x32xf32>
    %142 = arith.addf %68, %141 : vector<32x32xf32>
    %cst_50 = arith.constant dense<0.000000e+00> : vector<32xf32>
    %143 = vector.multi_reduction <add>, %142, %cst_50 [1] : vector<32x32xf32> to vector<32xf32>
    %144 = vector.shape_cast %143 : vector<32xf32> to vector<32x1xf32>
    %cst_51 = arith.constant 3.200000e+01 : f32
    %145 = vector.broadcast %cst_51 : f32 to vector<32x1xf32>
    %146 = arith.divf %144, %145 : vector<32x1xf32>
    %147 = vector.broadcast %146 : vector<32x1xf32> to vector<32x32xf32>
    %148 = arith.subf %142, %147 : vector<32x32xf32>
    %149 = arith.mulf %148, %148 : vector<32x32xf32>
    %cst_52 = arith.constant dense<0.000000e+00> : vector<32xf32>
    %150 = vector.multi_reduction <add>, %149, %cst_52 [1] : vector<32x32xf32> to vector<32xf32>
    %151 = vector.shape_cast %150 : vector<32xf32> to vector<32x1xf32>
    %cst_53 = arith.constant 3.200000e+01 : f32
    %152 = vector.broadcast %cst_53 : f32 to vector<32x1xf32>
    %153 = arith.divf %151, %152 : vector<32x1xf32>
    %154 = vector.broadcast %146 : vector<32x1xf32> to vector<32x32xf32>
    %155 = arith.subf %142, %154 : vector<32x32xf32>
    %cst_54 = arith.constant 9.99999996E-13 : f32
    %156 = vector.broadcast %cst_54 : f32 to vector<32x1xf32>
    %157 = arith.addf %153, %156 : vector<32x1xf32>
    %158 = math.rsqrt %157 : vector<32x1xf32>
    %159 = vector.broadcast %158 : vector<32x1xf32> to vector<32x32xf32>
    %160 = arith.mulf %155, %159 : vector<32x32xf32>
    %c0_55 = arith.constant 0 : index
    %c0_56 = arith.constant 0 : index
    %161 = vector.load %arg13[%c0_55, %c0_56] : memref<1x32xf32, #tpu.memory_space<vmem>>, vector<1x32xf32>
    %162 = vector.broadcast %161 : vector<1x32xf32> to vector<32x32xf32>
    %163 = arith.mulf %160, %162 : vector<32x32xf32>
    %c0_57 = arith.constant 0 : index
    %c0_58 = arith.constant 0 : index
    %164 = vector.load %arg14[%c0_57, %c0_58] : memref<1x32xf32, #tpu.memory_space<vmem>>, vector<1x32xf32>
    %165 = vector.broadcast %164 : vector<1x32xf32> to vector<32x32xf32>
    %166 = arith.addf %163, %165 : vector<32x32xf32>
    %167 = arith.truncf %166 : vector<32x32xf32> to vector<32x32xbf16>
    %c0_59 = arith.constant 0 : index
    %c0_60 = arith.constant 0 : index
    %168 = vector.load %arg15[%c0_59, %c0_60] : memref<32x128xbf16, #tpu.memory_space<vmem>>, vector<32x128xbf16>
    %cst_61 = arith.constant dense<0.000000e+00> : vector<32x128xf32>
    %169 = tpu.matmul %167, %168, %cst_61 {dimension_numbers = #tpu.dot_dimension_numbers<[1], [0], [0], [1], [0, 0, 1, 1], [], []>} : vector<32x32xbf16>, vector<32x128xbf16>, vector<32x128xf32> -> vector<32x128xf32>
    %c0_62 = arith.constant 0 : index
    %c0_63 = arith.constant 0 : index
    %170 = vector.load %arg16[%c0_62, %c0_63] : memref<1x128xf32, #tpu.memory_space<vmem>>, vector<1x128xf32>
    %171 = vector.broadcast %170 : vector<1x128xf32> to vector<32x128xf32>
    %172 = arith.addf %169, %171 : vector<32x128xf32>
    %cst_64 = arith.constant 5.000000e-01 : f32
    %173 = vector.broadcast %cst_64 : f32 to vector<32x128xf32>
    %174 = arith.mulf %173, %172 : vector<32x128xf32>
    %cst_65 = arith.constant 4.471500e-02 : f32
    %175 = vector.broadcast %cst_65 : f32 to vector<32x128xf32>
    %176 = arith.mulf %175, %172 : vector<32x128xf32>
    %177 = arith.mulf %176, %172 : vector<32x128xf32>
    %178 = arith.mulf %177, %172 : vector<32x128xf32>
    %179 = arith.addf %172, %178 : vector<32x128xf32>
    %cst_66 = arith.constant 0.797884583 : f32
    %180 = vector.broadcast %cst_66 : f32 to vector<32x128xf32>
    %181 = arith.mulf %180, %179 : vector<32x128xf32>
    %182 = math.tanh %181 : vector<32x128xf32>
    %cst_67 = arith.constant 1.000000e+00 : f32
    %183 = vector.broadcast %cst_67 : f32 to vector<32x128xf32>
    %184 = arith.addf %183, %182 : vector<32x128xf32>
    %185 = arith.mulf %174, %184 : vector<32x128xf32>
    %186 = arith.truncf %185 : vector<32x128xf32> to vector<32x128xbf16>
    %c0_68 = arith.constant 0 : index
    %c0_69 = arith.constant 0 : index
    %187 = vector.load %arg17[%c0_68, %c0_69] : memref<128x32xbf16, #tpu.memory_space<vmem>>, vector<128x32xbf16>
    %cst_70 = arith.constant dense<0.000000e+00> : vector<32x32xf32>
    %188 = tpu.matmul %186, %187, %cst_70 {dimension_numbers = #tpu.dot_dimension_numbers<[1], [0], [0], [1], [0, 0, 1, 1], [], []>} : vector<32x128xbf16>, vector<128x32xbf16>, vector<32x32xf32> -> vector<32x32xf32>
    %c0_71 = arith.constant 0 : index
    %c0_72 = arith.constant 0 : index
    %189 = vector.load %arg18[%c0_71, %c0_72] : memref<1x32xf32, #tpu.memory_space<vmem>>, vector<1x32xf32>
    %190 = vector.broadcast %189 : vector<1x32xf32> to vector<32x32xf32>
    %191 = arith.addf %188, %190 : vector<32x32xf32>
    %192 = arith.addf %166, %191 : vector<32x32xf32>
    %cst_73 = arith.constant dense<0.000000e+00> : vector<32xf32>
    %193 = vector.multi_reduction <add>, %192, %cst_73 [1] : vector<32x32xf32> to vector<32xf32>
    %194 = vector.shape_cast %193 : vector<32xf32> to vector<32x1xf32>
    %cst_74 = arith.constant 3.200000e+01 : f32
    %195 = vector.broadcast %cst_74 : f32 to vector<32x1xf32>
    %196 = arith.divf %194, %195 : vector<32x1xf32>
    %197 = vector.broadcast %196 : vector<32x1xf32> to vector<32x32xf32>
    %198 = arith.subf %192, %197 : vector<32x32xf32>
    %199 = arith.mulf %198, %198 : vector<32x32xf32>
    %cst_75 = arith.constant dense<0.000000e+00> : vector<32xf32>
    %200 = vector.multi_reduction <add>, %199, %cst_75 [1] : vector<32x32xf32> to vector<32xf32>
    %201 = vector.shape_cast %200 : vector<32xf32> to vector<32x1xf32>
    %cst_76 = arith.constant 3.200000e+01 : f32
    %202 = vector.broadcast %cst_76 : f32 to vector<32x1xf32>
    %203 = arith.divf %201, %202 : vector<32x1xf32>
    %204 = vector.broadcast %196 : vector<32x1xf32> to vector<32x32xf32>
    %205 = arith.subf %192, %204 : vector<32x32xf32>
    %cst_77 = arith.constant 9.99999996E-13 : f32
    %206 = vector.broadcast %cst_77 : f32 to vector<32x1xf32>
    %207 = arith.addf %203, %206 : vector<32x1xf32>
    %208 = math.rsqrt %207 : vector<32x1xf32>
    %209 = vector.broadcast %208 : vector<32x1xf32> to vector<32x32xf32>
    %210 = arith.mulf %205, %209 : vector<32x32xf32>
    %c0_78 = arith.constant 0 : index
    %c0_79 = arith.constant 0 : index
    %211 = vector.load %arg19[%c0_78, %c0_79] : memref<1x32xf32, #tpu.memory_space<vmem>>, vector<1x32xf32>
    %212 = vector.broadcast %211 : vector<1x32xf32> to vector<32x32xf32>
    %213 = arith.mulf %210, %212 : vector<32x32xf32>
    %c0_80 = arith.constant 0 : index
    %c0_81 = arith.constant 0 : index
    %214 = vector.load %arg20[%c0_80, %c0_81] : memref<1x32xf32, #tpu.memory_space<vmem>>, vector<1x32xf32>
    %215 = vector.broadcast %214 : vector<1x32xf32> to vector<32x32xf32>
    %216 = arith.addf %213, %215 : vector<32x32xf32>
    %217 = vector.shape_cast %216 : vector<32x32xf32> to vector<4x8x32xf32>
    %218 = vector.extract_strided_slice %217 {offsets = [0, 0, 0], sizes = [4, 1, 32], strides = [1, 1, 1]} : vector<4x8x32xf32> to vector<4x1x32xf32>
    %219 = vector.shape_cast %218 : vector<4x1x32xf32> to vector<4x32xf32>
    %220 = arith.truncf %219 : vector<4x32xf32> to vector<4x32xbf16>
    %c0_82 = arith.constant 0 : index
    %c0_83 = arith.constant 0 : index
    %221 = vector.load %arg21[%c0_82, %c0_83] : memref<32x32xbf16, #tpu.memory_space<vmem>>, vector<32x32xbf16>
    %cst_84 = arith.constant dense<0.000000e+00> : vector<4x32xf32>
    %222 = tpu.matmul %220, %221, %cst_84 {dimension_numbers = #tpu.dot_dimension_numbers<[1], [0], [0], [1], [0, 0, 1, 1], [], []>} : vector<4x32xbf16>, vector<32x32xbf16>, vector<4x32xf32> -> vector<4x32xf32>
    %c0_85 = arith.constant 0 : index
    %c0_86 = arith.constant 0 : index
    %223 = vector.load %arg22[%c0_85, %c0_86] : memref<1x32xf32, #tpu.memory_space<vmem>>, vector<1x32xf32>
    %224 = vector.broadcast %223 : vector<1x32xf32> to vector<4x32xf32>
    %225 = arith.addf %222, %224 : vector<4x32xf32>
    %226 = math.tanh %225 : vector<4x32xf32>
    %227 = tpu.iota {dimensions = array<i32: 0>} : vector<4x32xi32>
    %c4_i32_87 = arith.constant 4 : i32
    %228 = arith.muli %arg0, %c4_i32_87 : i32
    %229 = vector.broadcast %228 : i32 to vector<4x32xi32>
    %230 = arith.addi %227, %229 : vector<4x32xi32>
    %231 = tpu.iota {dimensions = array<i32: 1>} : vector<4x32xi32>
    %c7919_i32 = arith.constant 7919 : i32
    %232 = vector.broadcast %c7919_i32 : i32 to vector<4x32xi32>
    %233 = arith.muli %230, %232 : vector<4x32xi32>
    %234 = arith.addi %233, %231 : vector<4x32xi32>
    %c0_i32_88 = arith.constant 0 : i32
    %235 = vector.broadcast %c0_i32_88 : i32 to vector<4x32xi32>
    %236 = arith.addi %234, %235 : vector<4x32xi32>
    %c16_i32 = arith.constant 16 : i32
    %237 = vector.broadcast %c16_i32 : i32 to vector<4x32xi32>
    %238 = arith.shrsi %236, %237 : vector<4x32xi32>
    %239 = arith.xori %236, %238 : vector<4x32xi32>
    %c73244475_i32 = arith.constant 73244475 : i32
    %240 = vector.broadcast %c73244475_i32 : i32 to vector<4x32xi32>
    %241 = arith.muli %239, %240 : vector<4x32xi32>
    %c16_i32_89 = arith.constant 16 : i32
    %242 = vector.broadcast %c16_i32_89 : i32 to vector<4x32xi32>
    %243 = arith.shrsi %241, %242 : vector<4x32xi32>
    %244 = arith.xori %241, %243 : vector<4x32xi32>
    %c73244475_i32_90 = arith.constant 73244475 : i32
    %245 = vector.broadcast %c73244475_i32_90 : i32 to vector<4x32xi32>
    %246 = arith.muli %244, %245 : vector<4x32xi32>
    %c16_i32_91 = arith.constant 16 : i32
    %247 = vector.broadcast %c16_i32_91 : i32 to vector<4x32xi32>
    %248 = arith.shrsi %246, %247 : vector<4x32xi32>
    %249 = arith.xori %246, %248 : vector<4x32xi32>
    %c8388607_i32 = arith.constant 8388607 : i32
    %250 = vector.broadcast %c8388607_i32 : i32 to vector<4x32xi32>
    %251 = arith.andi %249, %250 : vector<4x32xi32>
    %252 = arith.sitofp %251 : vector<4x32xi32> to vector<4x32xf32>
    %cst_92 = arith.constant 1.1920929E-7 : f32
    %253 = vector.broadcast %cst_92 : f32 to vector<4x32xf32>
    %254 = arith.mulf %252, %253 : vector<4x32xf32>
    %cst_93 = arith.constant 1.000000e-01 : f32
    %255 = vector.broadcast %cst_93 : f32 to vector<4x32xf32>
    %256 = arith.cmpf oge, %254, %255 : vector<4x32xf32>
    %257 = arith.extui %256 : vector<4x32xi1> to vector<4x32xi32>
    %258 = arith.sitofp %257 : vector<4x32xi32> to vector<4x32xf32>
    %259 = arith.mulf %226, %258 : vector<4x32xf32>
    %cst_94 = arith.constant 1.11111116 : f32
    %260 = vector.broadcast %cst_94 : f32 to vector<4x32xf32>
    %261 = arith.mulf %259, %260 : vector<4x32xf32>
    %262 = arith.truncf %261 : vector<4x32xf32> to vector<4x32xbf16>
    %c0_95 = arith.constant 0 : index
    %c0_96 = arith.constant 0 : index
    %263 = vector.load %arg23[%c0_95, %c0_96] : memref<32x128xbf16, #tpu.memory_space<vmem>>, vector<32x128xbf16>
    %cst_97 = arith.constant dense<0.000000e+00> : vector<4x128xf32>
    %264 = tpu.matmul %262, %263, %cst_97 {dimension_numbers = #tpu.dot_dimension_numbers<[1], [0], [0], [1], [0, 0, 1, 1], [], []>} : vector<4x32xbf16>, vector<32x128xbf16>, vector<4x128xf32> -> vector<4x128xf32>
    %c0_98 = arith.constant 0 : index
    %c0_99 = arith.constant 0 : index
    %265 = vector.load %arg24[%c0_98, %c0_99] : memref<1x128xf32, #tpu.memory_space<vmem>>, vector<1x128xf32>
    %266 = vector.broadcast %265 : vector<1x128xf32> to vector<4x128xf32>
    %267 = arith.addf %264, %266 : vector<4x128xf32>
    %268 = vector.shape_cast %267 : vector<4x128xf32> to vector<1x4x128xf32>
    %c0_100 = arith.constant 0 : index
    %c0_101 = arith.constant 0 : index
    %c0_102 = arith.constant 0 : index
    %269 = vector.load %arg25[%c0_100, %c0_101, %c0_102] : memref<1x4x128xf32, #tpu.memory_space<vmem>>, vector<1x4x128xf32>
    tpu.vector_store %arg25[%c0_100, %c0_101, %c0_102], %268 {strides = array<i32>} : memref<1x4x128xf32, #tpu.memory_space<vmem>>, vector<1x4x128xf32>,
    return
  }
  func.func @transform_0(%arg0: i32, %arg1: memref<8xi32, #tpu.memory_space<smem>>) -> (i32, i32, i32) {
    %c0_i32 = arith.constant 0 : i32
    %c0_i32_0 = arith.constant 0 : i32
    %c0_i32_1 = arith.constant 0 : i32
    return %arg0, %c0_i32, %c0_i32_0 : i32, i32, i32
  }
  func.func @transform_1(%arg0: i32, %arg1: memref<8xi32, #tpu.memory_space<smem>>) -> (i32, i32) {
    %c0_i32 = arith.constant 0 : i32
    %c0_i32_0 = arith.constant 0 : i32
    %c0_i32_1 = arith.constant 0 : i32
    return %c0_i32, %c0_i32_0 : i32, i32
  }
  func.func @transform_2(%arg0: i32, %arg1: memref<8xi32, #tpu.memory_space<smem>>) -> (i32, i32) {
    %c0_i32 = arith.constant 0 : i32
    %c0_i32_0 = arith.constant 0 : i32
    %c0_i32_1 = arith.constant 0 : i32
    return %c0_i32, %c0_i32_0 : i32, i32
  }
  func.func @transform_3(%arg0: i32, %arg1: memref<8xi32, #tpu.memory_space<smem>>) -> (i32, i32) {
    %c0_i32 = arith.constant 0 : i32
    %c0_i32_0 = arith.constant 0 : i32
    %c0_i32_1 = arith.constant 0 : i32
    return %c0_i32, %c0_i32_0 : i32, i32
  }
  func.func @transform_4(%arg0: i32, %arg1: memref<8xi32, #tpu.memory_space<smem>>) -> (i32, i32) {
    %c0_i32 = arith.constant 0 : i32
    %c0_i32_0 = arith.constant 0 : i32
    %c0_i32_1 = arith.constant 0 : i32
    return %c0_i32, %c0_i32_0 : i32, i32
  }
  func.func @transform_5(%arg0: i32, %arg1: memref<8xi32, #tpu.memory_space<smem>>) -> (i32, i32) {
    %c0_i32 = arith.constant 0 : i32
    %c0_i32_0 = arith.constant 0 : i32
    %c0_i32_1 = arith.constant 0 : i32
    return %c0_i32, %c0_i32_0 : i32, i32
  }
  func.func @transform_6(%arg0: i32, %arg1: memref<8xi32, #tpu.memory_space<smem>>) -> (i32, i32) {
    %c0_i32 = arith.constant 0 : i32
    %c0_i32_0 = arith.constant 0 : i32
    %c0_i32_1 = arith.constant 0 : i32
    return %c0_i32, %c0_i32_0 : i32, i32
  }
  func.func @transform_7(%arg0: i32, %arg1: memref<8xi32, #tpu.memory_space<smem>>) -> (i32, i32) {
    %c0_i32 = arith.constant 0 : i32
    %c0_i32_0 = arith.constant 0 : i32
    %c0_i32_1 = arith.constant 0 : i32
    return %c0_i32, %c0_i32_0 : i32, i32
  }
  func.func @transform_8(%arg0: i32, %arg1: memref<8xi32, #tpu.memory_space<smem>>) -> (i32, i32) {
    %c0_i32 = arith.constant 0 : i32
    %c0_i32_0 = arith.constant 0 : i32
    %c0_i32_1 = arith.constant 0 : i32
    return %c0_i32, %c0_i32_0 : i32, i32
  }
  func.func @transform_9(%arg0: i32, %arg1: memref<8xi32, #tpu.memory_space<smem>>) -> (i32, i32) {
    %c0_i32 = arith.constant 0 : i32
    %c0_i32_0 = arith.constant 0 : i32
    %c0_i32_1 = arith.constant 0 : i32
    return %c0_i32, %c0_i32_0 : i32, i32
  }
  func.func @transform_10(%arg0: i32, %arg1: memref<8xi32, #tpu.memory_space<smem>>) -> (i32, i32) {
    %c0_i32 = arith.constant 0 : i32
    %c0_i32_0 = arith.constant 0 : i32
    %c0_i32_1 = arith.constant 0 : i32
    return %c0_i32, %c0_i32_0 : i32, i32
  }
  func.func @transform_11(%arg0: i32, %arg1: memref<8xi32, #tpu.memory_space<smem>>) -> (i32, i32) {
    %c0_i32 = arith.constant 0 : i32
    %c0_i32_0 = arith.constant 0 : i32
    %c0_i32_1 = arith.constant 0 : i32
    return %c0_i32, %c0_i32_0 : i32, i32
  }
  func.func @transform_12(%arg0: i32, %arg1: memref<8xi32, #tpu.memory_space<smem>>) -> (i32, i32) {
    %c0_i32 = arith.constant 0 : i32
    %c0_i32_0 = arith.constant 0 : i32
    %c0_i32_1 = arith.constant 0 : i32
    return %c0_i32, %c0_i32_0 : i32, i32
  }
  func.func @transform_13(%arg0: i32, %arg1: memref<8xi32, #tpu.memory_space<smem>>) -> (i32, i32) {
    %c0_i32 = arith.constant 0 : i32
    %c0_i32_0 = arith.constant 0 : i32
    %c0_i32_1 = arith.constant 0 : i32
    return %c0_i32, %c0_i32_0 : i32, i32
  }
  func.func @transform_14(%arg0: i32, %arg1: memref<8xi32, #tpu.memory_space<smem>>) -> (i32, i32) {
    %c0_i32 = arith.constant 0 : i32
    %c0_i32_0 = arith.constant 0 : i32
    %c0_i32_1 = arith.constant 0 : i32
    return %c0_i32, %c0_i32_0 : i32, i32
  }
  func.func @transform_15(%arg0: i32, %arg1: memref<8xi32, #tpu.memory_space<smem>>) -> (i32, i32) {
    %c0_i32 = arith.constant 0 : i32
    %c0_i32_0 = arith.constant 0 : i32
    %c0_i32_1 = arith.constant 0 : i32
    return %c0_i32, %c0_i32_0 : i32, i32
  }
  func.func @transform_16(%arg0: i32, %arg1: memref<8xi32, #tpu.memory_space<smem>>) -> (i32, i32) {
    %c0_i32 = arith.constant 0 : i32
    %c0_i32_0 = arith.constant 0 : i32
    %c0_i32_1 = arith.constant 0 : i32
    return %c0_i32, %c0_i32_0 : i32, i32
  }
  func.func @transform_17(%arg0: i32, %arg1: memref<8xi32, #tpu.memory_space<smem>>) -> (i32, i32) {
    %c0_i32 = arith.constant 0 : i32
    %c0_i32_0 = arith.constant 0 : i32
    %c0_i32_1 = arith.constant 0 : i32
    return %c0_i32, %c0_i32_0 : i32, i32
  }
  func.func @transform_18(%arg0: i32, %arg1: memref<8xi32, #tpu.memory_space<smem>>) -> (i32, i32) {
    %c0_i32 = arith.constant 0 : i32
    %c0_i32_0 = arith.constant 0 : i32
    %c0_i32_1 = arith.constant 0 : i32
    return %c0_i32, %c0_i32_0 : i32, i32
  }
  func.func @transform_19(%arg0: i32, %arg1: memref<8xi32, #tpu.memory_space<smem>>) -> (i32, i32) {
    %c0_i32 = arith.constant 0 : i32
    %c0_i32_0 = arith.constant 0 : i32
    %c0_i32_1 = arith.constant 0 : i32
    return %c0_i32, %c0_i32_0 : i32, i32
  }
  func.func @transform_20(%arg0: i32, %arg1: memref<8xi32, #tpu.memory_space<smem>>) -> (i32, i32) {
    %c0_i32 = arith.constant 0 : i32
    %c0_i32_0 = arith.constant 0 : i32
    %c0_i32_1 = arith.constant 0 : i32
    return %c0_i32, %c0_i32_0 : i32, i32
  }
  func.func @transform_21(%arg0: i32, %arg1: memref<8xi32, #tpu.memory_space<smem>>) -> (i32, i32) {
    %c0_i32 = arith.constant 0 : i32
    %c0_i32_0 = arith.constant 0 : i32
    %c0_i32_1 = arith.constant 0 : i32
    return %c0_i32, %c0_i32_0 : i32, i32
  }
  func.func @transform_22(%arg0: i32, %arg1: memref<8xi32, #tpu.memory_space<smem>>) -> (i32, i32) {
    %c0_i32 = arith.constant 0 : i32
    %c0_i32_0 = arith.constant 0 : i32
    %c0_i32_1 = arith.constant 0 : i32
    return %c0_i32, %c0_i32_0 : i32, i32
  }
  func.func @transform_23(%arg0: i32, %arg1: memref<8xi32, #tpu.memory_space<smem>>) -> (i32, i32, i32) {
    %c0_i32 = arith.constant 0 : i32
    %c0_i32_0 = arith.constant 0 : i32
    %c0_i32_1 = arith.constant 0 : i32
    return %arg0, %c0_i32, %c0_i32_0 : i32, i32, i32
  }
}

</mosaic_0001>

<llo_original>
// kernel: tpu_custom_call.1
$region0: #{tpu_custom_call.1}
  #allocation0 [shape = 'u32[]', space=smem, size = 0x4, offset = 0x4, fixed_abs, tag = 'smem constant byte address 0x4 - core index']
  #allocation1 [shape = 'u32[72,128]{1,0:T(1,128)}', space=vmem, size = 0x9000, scoped, tag = 'internal scratch']
  #allocation2 [shape = 's32[1]{0}', space=sflag, size = 0x4, scoped, tag = 'scoped memory for tpu_custom_call.1']
  #allocation3 [shape = 'u8[512]{0}', space=smem, size = 0x200, scoped, tag = 'prefetched SMEM operand 0']
  %s0 = inlined_call_operand.hbm [shape: s32[8], index: 0, kind: input, shape index: {}]
  %s1 = inlined_call_operand.vmem [shape: bf16[8,8,32], index: 1, kind: input, shape index: {}]
  %s2 = inlined_call_operand.vmem [shape: f32[1,32], index: 2, kind: input, shape index: {}]
  %s3 = inlined_call_operand.hbm [shape: f32[1,32], index: 3, kind: input, shape index: {}]
  %s4 = inlined_call_operand.vmem [shape: bf16[32,32], index: 4, kind: input, shape index: {}]
  %s5 = inlined_call_operand.hbm [shape: f32[1,32], index: 5, kind: input, shape index: {}]
  %s6 = inlined_call_operand.vmem [shape: bf16[32,32], index: 6, kind: input, shape index: {}]
  %s7 = inlined_call_operand.hbm [shape: f32[1,32], index: 7, kind: input, shape index: {}]
  %s8 = inlined_call_operand.vmem [shape: bf16[32,32], index: 8, kind: input, shape index: {}]
  %s9 = inlined_call_operand.hbm [shape: f32[1,32], index: 9, kind: input, shape index: {}]
  %s10 = inlined_call_operand.hbm [shape: bf16[32,32], index: 10, kind: input, shape index: {}]
  %s11 = inlined_call_operand.hbm [shape: f32[1,32], index: 11, kind: input, shape index: {}]
  %s12 = inlined_call_operand.hbm [shape: f32[1,32], index: 12, kind: input, shape index: {}]
  %s13 = inlined_call_operand.hbm [shape: f32[1,32], index: 13, kind: input, shape index: {}]
  %s14 = inlined_call_operand.hbm [shape: bf16[32,128], index: 14, kind: input, shape index: {}]
  %s15 = inlined_call_operand.hbm [shape: f32[1,128], index: 15, kind: input, shape index: {}]
  %s16 = inlined_call_operand.vmem [shape: bf16[128,32], index: 16, kind: input, shape index: {}]
  %s17 = inlined_call_operand.hbm [shape: f32[1,32], index: 17, kind: input, shape index: {}]
  %s18 = inlined_call_operand.hbm [shape: f32[1,32], index: 18, kind: input, shape index: {}]
  %s19 = inlined_call_operand.hbm [shape: f32[1,32], index: 19, kind: input, shape index: {}]
  %s20 = inlined_call_operand.vmem [shape: bf16[32,32], index: 20, kind: input, shape index: {}]
  %s21 = inlined_call_operand.vmem [shape: f32[1,32], index: 21, kind: input, shape index: {}]
  %s22 = inlined_call_operand.hbm [shape: bf16[32,128], index: 22, kind: input, shape index: {}]
  %s23 = inlined_call_operand.vmem [shape: f32[1,128], index: 23, kind: input, shape index: {}]
  %s24 = inlined_call_operand.hbm [shape: f32[2,4,128], index: 24, kind: output, shape index: {}]
  %s25 = sld [smem:[#allocation0]]
  $region181: #{tpu_custom_call.1} parent=0
    _
  %s27 = ssub.s32 1, %s25
  %s28 = scalar_select 0, %s27, %s25
  %s30 = sshll.u32 %s0, 4
  %s31 = int_to_ptr.hbm [resolvable:$true] %s30
  %33 = dma.hbm_to_smem %s31, 16, [#allocation3], [#allocation2]
  %35 = dma.done [#allocation2], 16
  %36 = sfence
  $region1: #{tpu_custom_call.1} parent=0
    #allocation4 [shape = 'u8[512]{0}', space=vmem, size = 0x400, scoped, tag = 'input window, operand 3, single buffered']
    #allocation5 [shape = 's32[2]{0}', space=sflag, size = 0x8, scoped, tag = 'scoped memory for tpu_custom_call.1']
    #allocation6 [shape = 's32[2]{0}', space=sflag, size = 0x8, scoped, tag = 'scoped memory for tpu_custom_call.1']
    #allocation7 [shape = 'u8[512]{0}', space=vmem, size = 0x400, scoped, tag = 'input window, operand 5, single buffered']
    #allocation8 [shape = 's32[1]{0}', space=sflag, size = 0x4, scoped, tag = 'scoped memory for tpu_custom_call.1']
    #allocation9 [shape = 'u8[512]{0}', space=vmem, size = 0x400, scoped, tag = 'input window, operand 7, single buffered']
    #allocation10 [shape = 'u8[512]{0}', space=vmem, size = 0x400, scoped, tag = 'input window, operand 9, single buffered']
    #allocation11 [shape = 's32[1]{0}', space=sflag, size = 0x4, scoped, tag = 'scoped memory for tpu_custom_call.1']
    #allocation12 [shape = 'u8[8192]{0}', space=vmem, size = 0x2000, scoped, tag = 'input window, operand 10, single buffered']
    #allocation13 [shape = 'u8[512]{0}', space=vmem, size = 0x400, scoped, tag = 'input window, operand 11, single buffered']
    #allocation14 [shape = 's32[1]{0}', space=sflag, size = 0x4, scoped, tag = 'scoped memory for tpu_custom_call.1']
    #allocation15 [shape = 'u8[512]{0}', space=vmem, size = 0x400, scoped, tag = 'input window, operand 12, single buffered']
    #allocation16 [shape = 'u8[512]{0}', space=vmem, size = 0x400, scoped, tag = 'input window, operand 13, single buffered']
    #allocation17 [shape = 's32[1]{0}', space=sflag, size = 0x4, scoped, tag = 'scoped memory for tpu_custom_call.1']
    #allocation18 [shape = 'u8[8192]{0}', space=vmem, size = 0x2000, scoped, tag = 'input window, operand 14, single buffered']
    #allocation19 [shape = 'u8[512]{0}', space=vmem, size = 0x400, scoped, tag = 'input window, operand 15, single buffered']
    #allocation20 [shape = 's32[1]{0}', space=sflag, size = 0x4, scoped, tag = 'scoped memory for tpu_custom_call.1']
    #allocation21 [shape = 'u8[512]{0}', space=vmem, size = 0x400, scoped, tag = 'input window, operand 17, single buffered']
    #allocation22 [shape = 'u8[512]{0}', space=vmem, size = 0x400, scoped, tag = 'input window, operand 18, single buffered']
    #allocation23 [shape = 's32[1]{0}', space=sflag, size = 0x4, scoped, tag = 'scoped memory for tpu_custom_call.1']
    #allocation24 [shape = 'u8[512]{0}', space=vmem, size = 0x400, scoped, tag = 'input window, operand 19, single buffered']
    #allocation25 [shape = 'u8[8192]{0}', space=vmem, size = 0x2000, scoped, tag = 'input window, operand 22, single buffered']
    #allocation26 [shape = 's32[1]{0}', space=sflag, size = 0x4, scoped, tag = 'scoped memory for tpu_custom_call.1']
    #allocation27 [shape = 'u8[4096]{0}', space=vmem, size = 0x1000, scoped, tag = 'output window, operand 0']
    %37 = vsyncpa [#allocation5], 0
    %38 = vsyncpa [#allocation8], 0
    %39 = vsyncpa [#allocation11], 0
    %40 = vsyncpa [#allocation14], 0
    %41 = vsyncpa [#allocation17], 0
    %42 = vsyncpa [#allocation20], 0
    %43 = vsyncpa [#allocation23], 0
    %44 = vsyncpa [#allocation26], 0
    %45 = vsyncpa [#allocation6], 0
    %s46 = scalar_lea.sflag [#allocation6], 1
    %47 = vsyncpa %s46, 0
    loop: start=0, step=1, limit=4
    $region2: #{tpu_custom_call.1} parent=1 // loop_pre_header
      _
    $region3: #{tpu_custom_call.1} parent=1 // loop_header
      %s49 = sphi 0, %s53
      %p50 = scmp.ge.s32.totalorder %s49, 4
      %s59 = sphi 0, %s61
      %s62 = sphi 0, %s59
      %s63 = sphi 0, %s62
      %s79 = sphi 0, %s63
      %s83 = sphi 0, %s83
      %s85 = sphi 0, %s83
      %s86 = sphi 0, %s85
      %s100 = sphi 0, %s86
      %s104 = sphi 0, %s104
      %s106 = sphi 0, %s104
      %s107 = sphi 0, %s106
      %s121 = sphi 0, %s107
      %s125 = sphi 0, %s125
      %s127 = sphi 0, %s125
      %s128 = sphi 0, %s127
      %s142 = sphi 0, %s128
      %s146 = sphi 0, %s146
      %s148 = sphi 0, %s146
      %s149 = sphi 0, %s148
      %s163 = sphi 0, %s149
      %s167 = sphi 0, %s167
      %s169 = sphi 0, %s167
      %s170 = sphi 0, %s169
      %s184 = sphi 0, %s170
      %s188 = sphi 0, %s188
      %s190 = sphi 0, %s188
      %s191 = sphi 0, %s190
      %s205 = sphi 0, %s191
      %s209 = sphi 0, %s209
      %s211 = sphi 0, %s209
      %s212 = sphi 0, %s211
      %s226 = sphi 0, %s212
      %s230 = sphi 0, %s230
      %s232 = sphi 0, %s230
      %s233 = sphi 0, %s232
      %s247 = sphi 0, %s233
      %s251 = sphi 0, %s251
      %s253 = sphi 0, %s251
      %s254 = sphi 0, %s253
      %s268 = sphi 0, %s254
      %s272 = sphi 0, %s272
      %s274 = sphi 0, %s272
      %s275 = sphi 0, %s274
      %s289 = sphi 0, %s275
      %s293 = sphi 0, %s293
      %s295 = sphi 0, %s293
      %s296 = sphi 0, %s295
      %s310 = sphi 0, %s296
      %s314 = sphi 0, %s314
      %s316 = sphi 0, %s314
      %s317 = sphi 0, %s316
      %s331 = sphi 0, %s317
      %s335 = sphi 0, %s335
      %s337 = sphi 0, %s335
      %s338 = sphi 0, %s337
      %s352 = sphi 0, %s338
      %s356 = sphi 0, %s356
      %s358 = sphi 0, %s356
      %s359 = sphi 0, %s358
      %s373 = sphi 0, %s359
      %s377 = sphi 0, %s377
      %s379 = sphi 0, %s377
      %s380 = sphi 0, %s379
      %s394 = sphi 0, %s380
      %s398 = sphi 0, %s398
      %s400 = sphi 0, %s398
      %s401 = sphi 0, %s400
      %s415 = sphi 0, %s401
      %s419 = sphi 0, %s419
      %s421 = sphi 0, %s419
      %s422 = sphi 0, %s421
      %s436 = sphi 0, %s422
      %s440 = sphi 0, %s440
      %s442 = sphi 0, %s440
      %s443 = sphi 0, %s442
      %s457 = sphi 0, %s443
      %s461 = sphi 0, %s461
      %s463 = sphi 0, %s461
      %s464 = sphi 0, %s463
      %s478 = sphi 0, %s464
      %s482 = sphi 0, %s482
      %s484 = sphi 0, %s482
      %s485 = sphi 0, %s484
      %s499 = sphi 0, %s485
      %s503 = sphi 0, %s503
      %s505 = sphi 0, %s503
      %s506 = sphi 0, %s505
      %s520 = sphi 0, %s506
      %s524 = sphi 0, %s524
      %s526 = sphi 0, %s524
      %s527 = sphi 0, %s526
      %s541 = sphi 0, %s527
      %s547 = sphi 0, %s549
      %s550 = sphi 0, %s547
      %s551 = sphi 0, %s550
      %s567 = sphi 0, %s551
    $region4: #{tpu_custom_call.1} parent=1 // loop_header_branch
      %52 = sbr.rel (%p50) target = $region8
    $region5: #{tpu_custom_call.1} parent=1 // loop_body
      %s54 = ssub.s32 %s49, 1
      %s55 = ssub.s32 %s49, 2
      %s56 = sadd.s32 %s49, 1
      %s57 = ssub.s32 %s49, %s56
      %p58 = scmp.eq.s32.totalorder %s57, 0
      %s60 = sadd.s32 %s59, 1
      %s61 = scalar_select %p58, %s59, %s60
      %p64 = pneg %p58
      %p65 = scmp.eq.s32.totalorder %s49, 1
      %p66 = por %p64, %p65
      %p67 = scmp.ne.s32.totalorder %s59, %s62
      %p68 = scmp.eq.s32.totalorder %s49, 0
      %p69 = por %p67, %p68
      %p70 = scmp.ne.s32.totalorder %s59, %s62
      %p71 = scmp.eq.s32.totalorder %s54, 1
      %p72 = por %p70, %p71
      %p73 = scmp.ne.s32.totalorder %s62, %s63
      %p74 = scmp.eq.s32.totalorder %s54, 0
      %p75 = por %p73, %p74
      %p76 = scmp.ne.s32.totalorder %s62, %s63
      %p77 = scmp.eq.s32.totalorder %s55, 1
      %p78 = por %p76, %p77
      %p80 = scmp.ne.s32.totalorder %s63, %s79
      %p81 = scmp.eq.s32.totalorder %s55, 0
      %p82 = por %p80, %p81
      %s84 = sadd.s32 %s83, 1
      %p87 = scmp.eq.s32.totalorder %s49, 1
      %p88 = scmp.ne.s32.totalorder %s83, %s85
      %p89 = scmp.eq.s32.totalorder %s49, 0
      %p90 = por %p88, %p89
      %p91 = scmp.ne.s32.totalorder %s83, %s85
      %p92 = scmp.eq.s32.totalorder %s54, 1
      %p93 = por %p91, %p92
      %p94 = scmp.ne.s32.totalorder %s85, %s86
      %p95 = scmp.eq.s32.totalorder %s54, 0
      %p96 = por %p94, %p95
      %p97 = scmp.ne.s32.totalorder %s85, %s86
      %p98 = scmp.eq.s32.totalorder %s55, 1
      %p99 = por %p97, %p98
      %p101 = scmp.ne.s32.totalorder %s86, %s100
      %p102 = scmp.eq.s32.totalorder %s55, 0
      %p103 = por %p101, %p102
      %s105 = sadd.s32 %s104, 1
      %p108 = scmp.eq.s32.totalorder %s49, 1
      %p109 = scmp.ne.s32.totalorder %s104, %s106
      %p110 = scmp.eq.s32.totalorder %s49, 0
      %p111 = por %p109, %p110
      %p112 = scmp.ne.s32.totalorder %s104, %s106
      %p113 = scmp.eq.s32.totalorder %s54, 1
      %p114 = por %p112, %p113
      %p115 = scmp.ne.s32.totalorder %s106, %s107
      %p116 = scmp.eq.s32.totalorder %s54, 0
      %p117 = por %p115, %p116
      %p118 = scmp.ne.s32.totalorder %s106, %s107
      %p119 = scmp.eq.s32.totalorder %s55, 1
      %p120 = por %p118, %p119
      %p122 = scmp.ne.s32.totalorder %s107, %s121
      %p123 = scmp.eq.s32.totalorder %s55, 0
      %p124 = por %p122, %p123
      %s126 = sadd.s32 %s125, 1
      %p129 = scmp.eq.s32.totalorder %s49, 1
      %p130 = scmp.ne.s32.totalorder %s125, %s127
      %p131 = scmp.eq.s32.totalorder %s49, 0
      %p132 = por %p130, %p131
      %p133 = scmp.ne.s32.totalorder %s125, %s127
      %p134 = scmp.eq.s32.totalorder %s54, 1
      %p135 = por %p133, %p134
      %p136 = scmp.ne.s32.totalorder %s127, %s128
      %p137 = scmp.eq.s32.totalorder %s54, 0
      %p138 = por %p136, %p137
      %p139 = scmp.ne.s32.totalorder %s127, %s128
      %p140 = scmp.eq.s32.totalorder %s55, 1
      %p141 = por %p139, %p140
      %p143 = scmp.ne.s32.totalorder %s128, %s142
      %p144 = scmp.eq.s32.totalorder %s55, 0
      %p145 = por %p143, %p144
      %s147 = sadd.s32 %s146, 1
      %p150 = scmp.eq.s32.totalorder %s49, 1
      %p151 = scmp.ne.s32.totalorder %s146, %s148
      %p152 = scmp.eq.s32.totalorder %s49, 0
      %p153 = por %p151, %p152
      %p154 = scmp.ne.s32.totalorder %s146, %s148
      %p155 = scmp.eq.s32.totalorder %s54, 1
      %p156 = por %p154, %p155
      %p157 = scmp.ne.s32.totalorder %s148, %s149
      %p158 = scmp.eq.s32.totalorder %s54, 0
      %p159 = por %p157, %p158
      %p160 = scmp.ne.s32.totalorder %s148, %s149
      %p161 = scmp.eq.s32.totalorder %s55, 1
      %p162 = por %p160, %p161
      %p164 = scmp.ne.s32.totalorder %s149, %s163
      %p165 = scmp.eq.s32.totalorder %s55, 0
      %p166 = por %p164, %p165
      %s168 = sadd.s32 %s167, 1
      %p171 = scmp.eq.s32.totalorder %s49, 1
      %p172 = scmp.ne.s32.totalorder %s167, %s169
      %p173 = scmp.eq.s32.totalorder %s49, 0
      %p174 = por %p172, %p173
      %p175 = scmp.ne.s32.totalorder %s167, %s169
      %p176 = scmp.eq.s32.totalorder %s54, 1
      %p177 = por %p175, %p176
      %p178 = scmp.ne.s32.totalorder %s169, %s170
      %p179 = scmp.eq.s32.totalorder %s54, 0
      %p180 = por %p178, %p179
      %p181 = scmp.ne.s32.totalorder %s169, %s170
      %p182 = scmp.eq.s32.totalorder %s55, 1
      %p183 = por %p181, %p182
      %p185 = scmp.ne.s32.totalorder %s170, %s184
      %p186 = scmp.eq.s32.totalorder %s55, 0
      %p187 = por %p185, %p186
      %s189 = sadd.s32 %s188, 1
      %p192 = scmp.eq.s32.totalorder %s49, 1
      %p193 = scmp.ne.s32.totalorder %s188, %s190
      %p194 = scmp.eq.s32.totalorder %s49, 0
      %p195 = por %p193, %p194
      %p196 = scmp.ne.s32.totalorder %s188, %s190
      %p197 = scmp.eq.s32.totalorder %s54, 1
      %p198 = por %p196, %p197
      %p199 = scmp.ne.s32.totalorder %s190, %s191
      %p200 = scmp.eq.s32.totalorder %s54, 0
      %p201 = por %p199, %p200
      %p202 = scmp.ne.s32.totalorder %s190, %s191
      %p203 = scmp.eq.s32.totalorder %s55, 1
      %p204 = por %p202, %p203
      %p206 = scmp.ne.s32.totalorder %s191, %s205
      %p207 = scmp.eq.s32.totalorder %s55, 0
      %p208 = por %p206, %p207
      %s210 = sadd.s32 %s209, 1
      %p213 = scmp.eq.s32.totalorder %s49, 1
      %p214 = scmp.ne.s32.totalorder %s209, %s211
      %p215 = scmp.eq.s32.totalorder %s49, 0
      %p216 = por %p214, %p215
      %p217 = scmp.ne.s32.totalorder %s209, %s211
      %p218 = scmp.eq.s32.totalorder %s54, 1
      %p219 = por %p217, %p218
      %p220 = scmp.ne.s32.totalorder %s211, %s212
      %p221 = scmp.eq.s32.totalorder %s54, 0
      %p222 = por %p220, %p221
      %p223 = scmp.ne.s32.totalorder %s211, %s212
      %p224 = scmp.eq.s32.totalorder %s55, 1
      %p225 = por %p223, %p224
      %p227 = scmp.ne.s32.totalorder %s212, %s226
      %p228 = scmp.eq.s32.totalorder %s55, 0
      %p229 = por %p227, %p228
      %s231 = sadd.s32 %s230, 1
      %p234 = scmp.eq.s32.totalorder %s49, 1
      %p235 = scmp.ne.s32.totalorder %s230, %s232
      %p236 = scmp.eq.s32.totalorder %s49, 0
      %p237 = por %p235, %p236
      %p238 = scmp.ne.s32.totalorder %s230, %s232
      %p239 = scmp.eq.s32.totalorder %s54, 1
      %p240 = por %p238, %p239
      %p241 = scmp.ne.s32.totalorder %s232, %s233
      %p242 = scmp.eq.s32.totalorder %s54, 0
      %p243 = por %p241, %p242
      %p244 = scmp.ne.s32.totalorder %s232, %s233
      %p245 = scmp.eq.s32.totalorder %s55, 1
      %p246 = por %p244, %p245
      %p248 = scmp.ne.s32.totalorder %s233, %s247
      %p249 = scmp.eq.s32.totalorder %s55, 0
      %p250 = por %p248, %p249
      %s252 = sadd.s32 %s251, 1
      %p255 = scmp.eq.s32.totalorder %s49, 1
      %p256 = scmp.ne.s32.totalorder %s251, %s253
      %p257 = scmp.eq.s32.totalorder %s49, 0
      %p258 = por %p256, %p257
      %p259 = scmp.ne.s32.totalorder %s251, %s253
      %p260 = scmp.eq.s32.totalorder %s54, 1
      %p261 = por %p259, %p260
      %p262 = scmp.ne.s32.totalorder %s253, %s254
      %p263 = scmp.eq.s32.totalorder %s54, 0
      %p264 = por %p262, %p263
      %p265 = scmp.ne.s32.totalorder %s253, %s254
      %p266 = scmp.eq.s32.totalorder %s55, 1
      %p267 = por %p265, %p266
      %p269 = scmp.ne.s32.totalorder %s254, %s268
      %p270 = scmp.eq.s32.totalorder %s55, 0
      %p271 = por %p269, %p270
      %s273 = sadd.s32 %s272, 1
      %p276 = scmp.eq.s32.totalorder %s49, 1
      %p277 = scmp.ne.s32.totalorder %s272, %s274
      %p278 = scmp.eq.s32.totalorder %s49, 0
      %p279 = por %p277, %p278
      %p280 = scmp.ne.s32.totalorder %s272, %s274
      %p281 = scmp.eq.s32.totalorder %s54, 1
      %p282 = por %p280, %p281
      %p283 = scmp.ne.s32.totalorder %s274, %s275
      %p284 = scmp.eq.s32.totalorder %s54, 0
      %p285 = por %p283, %p284
      %p286 = scmp.ne.s32.totalorder %s274, %s275
      %p287 = scmp.eq.s32.totalorder %s55, 1
      %p288 = por %p286, %p287
      %p290 = scmp.ne.s32.totalorder %s275, %s289
      %p291 = scmp.eq.s32.totalorder %s55, 0
      %p292 = por %p290, %p291
      %s294 = sadd.s32 %s293, 1
      %p297 = scmp.eq.s32.totalorder %s49, 1
      %p298 = scmp.ne.s32.totalorder %s293, %s295
      %p299 = scmp.eq.s32.totalorder %s49, 0
      %p300 = por %p298, %p299
      %p301 = scmp.ne.s32.totalorder %s293, %s295
      %p302 = scmp.eq.s32.totalorder %s54, 1
      %p303 = por %p301, %p302
      %p304 = scmp.ne.s32.totalorder %s295, %s296
      %p305 = scmp.eq.s32.totalorder %s54, 0
      %p306 = por %p304, %p305
      %p307 = scmp.ne.s32.totalorder %s295, %s296
      %p308 = scmp.eq.s32.totalorder %s55, 1
      %p309 = por %p307, %p308
      %p311 = scmp.ne.s32.totalorder %s296, %s310
      %p312 = scmp.eq.s32.totalorder %s55, 0
      %p313 = por %p311, %p312
      %s315 = sadd.s32 %s314, 1
      %p318 = scmp.eq.s32.totalorder %s49, 1
      %p319 = scmp.ne.s32.totalorder %s314, %s316
      %p320 = scmp.eq.s32.totalorder %s49, 0
      %p321 = por %p319, %p320
      %p322 = scmp.ne.s32.totalorder %s314, %s316
      %p323 = scmp.eq.s32.totalorder %s54, 1
      %p324 = por %p322, %p323
      %p325 = scmp.ne.s32.totalorder %s316, %s317
      %p326 = scmp.eq.s32.totalorder %s54, 0
      %p327 = por %p325, %p326
      %p328 = scmp.ne.s32.totalorder %s316, %s317
      %p329 = scmp.eq.s32.totalorder %s55, 1
      %p330 = por %p328, %p329
      %p332 = scmp.ne.s32.totalorder %s317, %s331
      %p333 = scmp.eq.s32.totalorder %s55, 0
      %p334 = por %p332, %p333
      %s336 = sadd.s32 %s335, 1
      %p339 = scmp.eq.s32.totalorder %s49, 1
      %p340 = scmp.ne.s32.totalorder %s335, %s337
      %p341 = scmp.eq.s32.totalorder %s49, 0
      %p342 = por %p340, %p341
      %p343 = scmp.ne.s32.totalorder %s335, %s337
      %p344 = scmp.eq.s32.totalorder %s54, 1
      %p345 = por %p343, %p344
      %p346 = scmp.ne.s32.totalorder %s337, %s338
      %p347 = scmp.eq.s32.totalorder %s54, 0
      %p348 = por %p346, %p347
      %p349 = scmp.ne.s32.totalorder %s337, %s338
      %p350 = scmp.eq.s32.totalorder %s55, 1
      %p351 = por %p349, %p350
      %p353 = scmp.ne.s32.totalorder %s338, %s352
      %p354 = scmp.eq.s32.totalorder %s55, 0
      %p355 = por %p353, %p354
      %s357 = sadd.s32 %s356, 1
      %p360 = scmp.eq.s32.totalorder %s49, 1
      %p361 = scmp.ne.s32.totalorder %s356, %s358
      %p362 = scmp.eq.s32.totalorder %s49, 0
      %p363 = por %p361, %p362
      %p364 = scmp.ne.s32.totalorder %s356, %s358
      %p365 = scmp.eq.s32.totalorder %s54, 1
      %p366 = por %p364, %p365
      %p367 = scmp.ne.s32.totalorder %s358, %s359
      %p368 = scmp.eq.s32.totalorder %s54, 0
      %p369 = por %p367, %p368
      %p370 = scmp.ne.s32.totalorder %s358, %s359
      %p371 = scmp.eq.s32.totalorder %s55, 1
      %p372 = por %p370, %p371
      %p374 = scmp.ne.s32.totalorder %s359, %s373
      %p375 = scmp.eq.s32.totalorder %s55, 0
      %p376 = por %p374, %p375
      %s378 = sadd.s32 %s377, 1
      %p381 = scmp.eq.s32.totalorder %s49, 1
      %p382 = scmp.ne.s32.totalorder %s377, %s379
      %p383 = scmp.eq.s32.totalorder %s49, 0
      %p384 = por %p382, %p383
      %p385 = scmp.ne.s32.totalorder %s377, %s379
      %p386 = scmp.eq.s32.totalorder %s54, 1
      %p387 = por %p385, %p386
      %p388 = scmp.ne.s32.totalorder %s379, %s380
      %p389 = scmp.eq.s32.totalorder %s54, 0
      %p390 = por %p388, %p389
      %p391 = scmp.ne.s32.totalorder %s379, %s380
      %p392 = scmp.eq.s32.totalorder %s55, 1
      %p393 = por %p391, %p392
      %p395 = scmp.ne.s32.totalorder %s380, %s394
      %p396 = scmp.eq.s32.totalorder %s55, 0
      %p397 = por %p395, %p396
      %s399 = sadd.s32 %s398, 1
      %p402 = scmp.eq.s32.totalorder %s49, 1
      %p403 = scmp.ne.s32.totalorder %s398, %s400
      %p404 = scmp.eq.s32.totalorder %s49, 0
      %p405 = por %p403, %p404
      %p406 = scmp.ne.s32.totalorder %s398, %s400
      %p407 = scmp.eq.s32.totalorder %s54, 1
      %p408 = por %p406, %p407
      %p409 = scmp.ne.s32.totalorder %s400, %s401
      %p410 = scmp.eq.s32.totalorder %s54, 0
      %p411 = por %p409, %p410
      %p412 = scmp.ne.s32.totalorder %s400, %s401
      %p413 = scmp.eq.s32.totalorder %s55, 1
      %p414 = por %p412, %p413
      %p416 = scmp.ne.s32.totalorder %s401, %s415
      %p417 = scmp.eq.s32.totalorder %s55, 0
      %p418 = por %p416, %p417
      %s420 = sadd.s32 %s419, 1
      %p423 = scmp.eq.s32.totalorder %s49, 1
      %p424 = scmp.ne.s32.totalorder %s419, %s421
      %p425 = scmp.eq.s32.totalorder %s49, 0
      %p426 = por %p424, %p425
      %p427 = scmp.ne.s32.totalorder %s419, %s421
      %p428 = scmp.eq.s32.totalorder %s54, 1
      %p429 = por %p427, %p428
      %p430 = scmp.ne.s32.totalorder %s421, %s422
      %p431 = scmp.eq.s32.totalorder %s54, 0
      %p432 = por %p430, %p431
      %p433 = scmp.ne.s32.totalorder %s421, %s422
      %p434 = scmp.eq.s32.totalorder %s55, 1
      %p435 = por %p433, %p434
      %p437 = scmp.ne.s32.totalorder %s422, %s436
      %p438 = scmp.eq.s32.totalorder %s55, 0
      %p439 = por %p437, %p438
      %s441 = sadd.s32 %s440, 1
      %p444 = scmp.eq.s32.totalorder %s49, 1
      %p445 = scmp.ne.s32.totalorder %s440, %s442
      %p446 = scmp.eq.s32.totalorder %s49, 0
      %p447 = por %p445, %p446
      %p448 = scmp.ne.s32.totalorder %s440, %s442
      %p449 = scmp.eq.s32.totalorder %s54, 1
      %p450 = por %p448, %p449
      %p451 = scmp.ne.s32.totalorder %s442, %s443
      %p452 = scmp.eq.s32.totalorder %s54, 0
      %p453 = por %p451, %p452
      %p454 = scmp.ne.s32.totalorder %s442, %s443
      %p455 = scmp.eq.s32.totalorder %s55, 1
      %p456 = por %p454, %p455
      %p458 = scmp.ne.s32.totalorder %s443, %s457
      %p459 = scmp.eq.s32.totalorder %s55, 0
      %p460 = por %p458, %p459
      %s462 = sadd.s32 %s461, 1
      %p465 = scmp.eq.s32.totalorder %s49, 1
      %p466 = scmp.ne.s32.totalorder %s461, %s463
      %p467 = scmp.eq.s32.totalorder %s49, 0
      %p468 = por %p466, %p467
      %p469 = scmp.ne.s32.totalorder %s461, %s463
      %p470 = scmp.eq.s32.totalorder %s54, 1
      %p471 = por %p469, %p470
      %p472 = scmp.ne.s32.totalorder %s463, %s464
      %p473 = scmp.eq.s32.totalorder %s54, 0
      %p474 = por %p472, %p473
      %p475 = scmp.ne.s32.totalorder %s463, %s464
      %p476 = scmp.eq.s32.totalorder %s55, 1
      %p477 = por %p475, %p476
      %p479 = scmp.ne.s32.totalorder %s464, %s478
      %p480 = scmp.eq.s32.totalorder %s55, 0
      %p481 = por %p479, %p480
      %s483 = sadd.s32 %s482, 1
      %p486 = scmp.eq.s32.totalorder %s49, 1
      %p487 = scmp.ne.s32.totalorder %s482, %s484
      %p488 = scmp.eq.s32.totalorder %s49, 0
      %p489 = por %p487, %p488
      %p490 = scmp.ne.s32.totalorder %s482, %s484
      %p491 = scmp.eq.s32.totalorder %s54, 1
      %p492 = por %p490, %p491
      %p493 = scmp.ne.s32.totalorder %s484, %s485
      %p494 = scmp.eq.s32.totalorder %s54, 0
      %p495 = por %p493, %p494
      %p496 = scmp.ne.s32.totalorder %s484, %s485
      %p497 = scmp.eq.s32.totalorder %s55, 1
      %p498 = por %p496, %p497
      %p500 = scmp.ne.s32.totalorder %s485, %s499
      %p501 = scmp.eq.s32.totalorder %s55, 0
      %p502 = por %p500, %p501
      %s504 = sadd.s32 %s503, 1
      %p507 = scmp.eq.s32.totalorder %s49, 1
      %p508 = scmp.ne.s32.totalorder %s503, %s505
      %p509 = scmp.eq.s32.totalorder %s49, 0
      %p510 = por %p508, %p509
      %p511 = scmp.ne.s32.totalorder %s503, %s505
      %p512 = scmp.eq.s32.totalorder %s54, 1
      %p513 = por %p511, %p512
      %p514 = scmp.ne.s32.totalorder %s505, %s506
      %p515 = scmp.eq.s32.totalorder %s54, 0
      %p516 = por %p514, %p515
      %p517 = scmp.ne.s32.totalorder %s505, %s506
      %p518 = scmp.eq.s32.totalorder %s55, 1
      %p519 = por %p517, %p518
      %p521 = scmp.ne.s32.totalorder %s506, %s520
      %p522 = scmp.eq.s32.totalorder %s55, 0
      %p523 = por %p521, %p522
      %s525 = sadd.s32 %s524, 1
      %p528 = scmp.eq.s32.totalorder %s49, 1
      %p529 = scmp.ne.s32.totalorder %s524, %s526
      %p530 = scmp.eq.s32.totalorder %s49, 0
      %p531 = por %p529, %p530
      %p532 = scmp.ne.s32.totalorder %s524, %s526
      %p533 = scmp.eq.s32.totalorder %s54, 1
      %p534 = por %p532, %p533
      %p535 = scmp.ne.s32.totalorder %s526, %s527
      %p536 = scmp.eq.s32.totalorder %s54, 0
      %p537 = por %p535, %p536
      %p538 = scmp.ne.s32.totalorder %s526, %s527
      %p539 = scmp.eq.s32.totalorder %s55, 1
      %p540 = por %p538, %p539
      %p542 = scmp.ne.s32.totalorder %s527, %s541
      %p543 = scmp.eq.s32.totalorder %s55, 0
      %p544 = por %p542, %p543
      %s545 = ssub.s32 %s49, %s56
      %p546 = scmp.eq.s32.totalorder %s545, 0
      %s548 = sadd.s32 %s547, 1
      %s549 = scalar_select %p546, %s547, %s548
      %p552 = pneg %p546
      %p553 = scmp.eq.s32.totalorder %s49, 1
      %p554 = por %p552, %p553
      %p555 = scmp.ne.s32.totalorder %s547, %s550
      %p556 = scmp.eq.s32.totalorder %s49, 0
      %p557 = por %p555, %p556
      %p558 = scmp.ne.s32.totalorder %s547, %s550
      %p559 = scmp.eq.s32.totalorder %s54, 1
      %p560 = por %p558, %p559
      %p561 = scmp.ne.s32.totalorder %s550, %s551
      %p562 = scmp.eq.s32.totalorder %s54, 0
      %p563 = por %p561, %p562
      %p564 = scmp.ne.s32.totalorder %s550, %s551
      %p565 = scmp.eq.s32.totalorder %s55, 1
      %p566 = por %p564, %p565
      %p568 = scmp.ne.s32.totalorder %s551, %s567
      %p569 = scmp.eq.s32.totalorder %s55, 0
      %p570 = por %p568, %p569
      %p571 = scmp.le.s32.totalorder 1, %s49
      %p572 = scmp.lt.s32.totalorder %s49, 3
      %p573 = pnand %p571, %p572
      %p574 = pneg %p573
      // Predicated region
      $region9: #{tpu_custom_call.1} parent=5 // pred_check
        _
      $region10: #{tpu_custom_call.1} parent=5 // pred_check_branch
        %576 = sbr.rel (%p573) target = $region12
      $region11: #{tpu_custom_call.1} parent=5 // pred_region
        %s577 = ssub.s32 %s49, 1
        // Predicated region
        $region13: #{tpu_custom_call.1} parent=11 // pred_check
          %p578 = pneg %p96
        $region14: #{tpu_custom_call.1} parent=11 // pred_check_branch
          %580 = sbr.rel (%p578) target = $region16
        $region15: #{tpu_custom_call.1} parent=11 // pred_region
          _
        $region16: #{tpu_custom_call.1} parent=11 // pred_fallthru
          _
        // Predicated region
        $region17: #{tpu_custom_call.1} parent=11 // pred_check
          %p581 = pneg %p117
        $region18: #{tpu_custom_call.1} parent=11 // pred_check_branch
          %583 = sbr.rel (%p581) target = $region20
        $region19: #{tpu_custom_call.1} parent=11 // pred_region
          %585 = vsyncadd [#allocation5], 0
          %s587 = sshll.u32 %s3, 4
          %s588 = int_to_ptr.hbm [resolvable:$true] %s587
          %s589 = sshll.u32 [#allocation4], 4
          %s590 = int_to_ptr.vmem [resolvable:$true] %s589
          %592 = dma.hbm_to_vmem [thread:$0]  %s588, 16, %s590, [#allocation5]
        $region20: #{tpu_custom_call.1} parent=11 // pred_fallthru
          _
        // Predicated region
        $region21: #{tpu_custom_call.1} parent=11 // pred_check
          %p593 = pneg %p138
        $region22: #{tpu_custom_call.1} parent=11 // pred_check_branch
          %595 = sbr.rel (%p593) target = $region24
        $region23: #{tpu_custom_call.1} parent=11 // pred_region
          _
        $region24: #{tpu_custom_call.1} parent=11 // pred_fallthru
          _
        // Predicated region
        $region25: #{tpu_custom_call.1} parent=11 // pred_check
          %p596 = pneg %p159
        $region26: #{tpu_custom_call.1} parent=11 // pred_check_branch
          %598 = sbr.rel (%p596) target = $region28
        $region27: #{tpu_custom_call.1} parent=11 // pred_region
          %600 = vsyncadd [#allocation8], 0
          %s602 = sshll.u32 %s5, 4
          %s603 = int_to_ptr.hbm [resolvable:$true] %s602
          %s604 = sshll.u32 [#allocation7], 4
          %s605 = int_to_ptr.vmem [resolvable:$true] %s604
          %607 = dma.hbm_to_vmem [thread:$0]  %s603, 16, %s605, [#allocation8]
        $region28: #{tpu_custom_call.1} parent=11 // pred_fallthru
          _
        // Predicated region
        $region29: #{tpu_custom_call.1} parent=11 // pred_check
          %p608 = pneg %p180
        $region30: #{tpu_custom_call.1} parent=11 // pred_check_branch
          %610 = sbr.rel (%p608) target = $region32
        $region31: #{tpu_custom_call.1} parent=11 // pred_region
          _
        $region32: #{tpu_custom_call.1} parent=11 // pred_fallthru
          _
        // Predicated region
        $region33: #{tpu_custom_call.1} parent=11 // pred_check
          %p611 = pneg %p201
        $region34: #{tpu_custom_call.1} parent=11 // pred_check_branch
          %613 = sbr.rel (%p611) target = $region36
        $region35: #{tpu_custom_call.1} parent=11 // pred_region
          %615 = vsyncadd [#allocation8], 0
          %s617 = sshll.u32 %s7, 4
          %s618 = int_to_ptr.hbm [resolvable:$true] %s617
          %s619 = sshll.u32 [#allocation9], 4
          %s620 = int_to_ptr.vmem [resolvable:$true] %s619
          %622 = dma.hbm_to_vmem [thread:$0]  %s618, 16, %s620, [#allocation8]
        $region36: #{tpu_custom_call.1} parent=11 // pred_fallthru
          _
        // Predicated region
        $region37: #{tpu_custom_call.1} parent=11 // pred_check
          %p623 = pneg %p222
        $region38: #{tpu_custom_call.1} parent=11 // pred_check_branch
          %625 = sbr.rel (%p623) target = $region40
        $region39: #{tpu_custom_call.1} parent=11 // pred_region
          _
        $region40: #{tpu_custom_call.1} parent=11 // pred_fallthru
          _
        // Predicated region
        $region41: #{tpu_custom_call.1} parent=11 // pred_check
          %p626 = pneg %p243
        $region42: #{tpu_custom_call.1} parent=11 // pred_check_branch
          %628 = sbr.rel (%p626) target = $region44
        $region43: #{tpu_custom_call.1} parent=11 // pred_region
          %630 = vsyncadd [#allocation11], 0
          %s632 = sshll.u32 %s9, 4
          %s633 = int_to_ptr.hbm [resolvable:$true] %s632
          %s634 = sshll.u32 [#allocation10], 4
          %s635 = int_to_ptr.vmem [resolvable:$true] %s634
          %637 = dma.hbm_to_vmem [thread:$0]  %s633, 16, %s635, [#allocation11]
        $region44: #{tpu_custom_call.1} parent=11 // pred_fallthru
          _
        // Predicated region
        $region45: #{tpu_custom_call.1} parent=11 // pred_check
          %p638 = pneg %p264
        $region46: #{tpu_custom_call.1} parent=11 // pred_check_branch
          %640 = sbr.rel (%p638) target = $region48
        $region47: #{tpu_custom_call.1} parent=11 // pred_region
          %642 = vsyncadd [#allocation11], 0
          %s643 = sshll.u32 %s10, 4
          %s644 = int_to_ptr.hbm [resolvable:$true] %s643
          %s645 = sshll.u32 [#allocation12], 4
          %s646 = int_to_ptr.vmem [resolvable:$true] %s645
          %651 = dma.hbm_to_vmem [thread:$0]  %s644, 256, %s646, [#allocation11], 64, 64, 4
        $region48: #{tpu_custom_call.1} parent=11 // pred_fallthru
          _
        // Predicated region
        $region49: #{tpu_custom_call.1} parent=11 // pred_check
          %p652 = pneg %p285
        $region50: #{tpu_custom_call.1} parent=11 // pred_check_branch
          %654 = sbr.rel (%p652) target = $region52
        $region51: #{tpu_custom_call.1} parent=11 // pred_region
          %656 = vsyncadd [#allocation14], 0
          %s658 = sshll.u32 %s11, 4
          %s659 = int_to_ptr.hbm [resolvable:$true] %s658
          %s660 = sshll.u32 [#allocation13], 4
          %s661 = int_to_ptr.vmem [resolvable:$true] %s660
          %663 = dma.hbm_to_vmem [thread:$0]  %s659, 16, %s661, [#allocation14]
        $region52: #{tpu_custom_call.1} parent=11 // pred_fallthru
          _
        // Predicated region
        $region53: #{tpu_custom_call.1} parent=11 // pred_check
          %p664 = pneg %p306
        $region54: #{tpu_custom_call.1} parent=11 // pred_check_branch
          %666 = sbr.rel (%p664) target = $region56
        $region55: #{tpu_custom_call.1} parent=11 // pred_region
          %668 = vsyncadd [#allocation14], 0
          %s670 = sshll.u32 %s12, 4
          %s671 = int_to_ptr.hbm [resolvable:$true] %s670
          %s672 = sshll.u32 [#allocation15], 4
          %s673 = int_to_ptr.vmem [resolvable:$true] %s672
          %675 = dma.hbm_to_vmem [thread:$0]  %s671, 16, %s673, [#allocation14]
        $region56: #{tpu_custom_call.1} parent=11 // pred_fallthru
          _
        // Predicated region
        $region57: #{tpu_custom_call.1} parent=11 // pred_check
          %p676 = pneg %p327
        $region58: #{tpu_custom_call.1} parent=11 // pred_check_branch
          %678 = sbr.rel (%p676) target = $region60
        $region59: #{tpu_custom_call.1} parent=11 // pred_region
          %680 = vsyncadd [#allocation17], 0
          %s682 = sshll.u32 %s13, 4
          %s683 = int_to_ptr.hbm [resolvable:$true] %s682
          %s684 = sshll.u32 [#allocation16], 4
          %s685 = int_to_ptr.vmem [resolvable:$true] %s684
          %687 = dma.hbm_to_vmem [thread:$0]  %s683, 16, %s685, [#allocation17]
        $region60: #{tpu_custom_call.1} parent=11 // pred_fallthru
          _
        // Predicated region
        $region61: #{tpu_custom_call.1} parent=11 // pred_check
          %p688 = pneg %p348
        $region62: #{tpu_custom_call.1} parent=11 // pred_check_branch
          %690 = sbr.rel (%p688) target = $region64
        $region63: #{tpu_custom_call.1} parent=11 // pred_region
          %692 = vsyncadd [#allocation17], 0
          %s693 = sshll.u32 %s14, 4
          %s694 = int_to_ptr.hbm [resolvable:$true] %s693
          %s695 = sshll.u32 [#allocation18], 4
          %s696 = int_to_ptr.vmem [resolvable:$true] %s695
          %701 = dma.hbm_to_vmem [thread:$0]  %s694, 256, %s696, [#allocation17], 64, 64, 4
        $region64: #{tpu_custom_call.1} parent=11 // pred_fallthru
          _
        // Predicated region
        $region65: #{tpu_custom_call.1} parent=11 // pred_check
          %p702 = pneg %p369
        $region66: #{tpu_custom_call.1} parent=11 // pred_check_branch
          %704 = sbr.rel (%p702) target = $region68
        $region67: #{tpu_custom_call.1} parent=11 // pred_region
          %706 = vsyncadd [#allocation20], 0
          %s708 = sshll.u32 %s15, 4
          %s709 = int_to_ptr.hbm [resolvable:$true] %s708
          %s710 = sshll.u32 [#allocation19], 4
          %s711 = int_to_ptr.vmem [resolvable:$true] %s710
          %713 = dma.hbm_to_vmem [thread:$0]  %s709, 16, %s711, [#allocation20]
        $region68: #{tpu_custom_call.1} parent=11 // pred_fallthru
          _
        // Predicated region
        $region69: #{tpu_custom_call.1} parent=11 // pred_check
          %p714 = pneg %p390
        $region70: #{tpu_custom_call.1} parent=11 // pred_check_branch
          %716 = sbr.rel (%p714) target = $region72
        $region71: #{tpu_custom_call.1} parent=11 // pred_region
          _
        $region72: #{tpu_custom_call.1} parent=11 // pred_fallthru
          _
        // Predicated region
        $region73: #{tpu_custom_call.1} parent=11 // pred_check
          %p717 = pneg %p411
        $region74: #{tpu_custom_call.1} parent=11 // pred_check_branch
          %719 = sbr.rel (%p717) target = $region76
        $region75: #{tpu_custom_call.1} parent=11 // pred_region
          %721 = vsyncadd [#allocation20], 0
          %s723 = sshll.u32 %s17, 4
          %s724 = int_to_ptr.hbm [resolvable:$true] %s723
          %s725 = sshll.u32 [#allocation21], 4
          %s726 = int_to_ptr.vmem [resolvable:$true] %s725
          %728 = dma.hbm_to_vmem [thread:$0]  %s724, 16, %s726, [#allocation20]
        $region76: #{tpu_custom_call.1} parent=11 // pred_fallthru
          _
        // Predicated region
        $region77: #{tpu_custom_call.1} parent=11 // pred_check
          %p729 = pneg %p432
        $region78: #{tpu_custom_call.1} parent=11 // pred_check_branch
          %731 = sbr.rel (%p729) target = $region80
        $region79: #{tpu_custom_call.1} parent=11 // pred_region
          %733 = vsyncadd [#allocation23], 0
          %s735 = sshll.u32 %s18, 4
          %s736 = int_to_ptr.hbm [resolvable:$true] %s735
          %s737 = sshll.u32 [#allocation22], 4
          %s738 = int_to_ptr.vmem [resolvable:$true] %s737
          %740 = dma.hbm_to_vmem [thread:$0]  %s736, 16, %s738, [#allocation23]
        $region80: #{tpu_custom_call.1} parent=11 // pred_fallthru
          _
        // Predicated region
        $region81: #{tpu_custom_call.1} parent=11 // pred_check
          %p741 = pneg %p453
        $region82: #{tpu_custom_call.1} parent=11 // pred_check_branch
          %743 = sbr.rel (%p741) target = $region84
        $region83: #{tpu_custom_call.1} parent=11 // pred_region
          %745 = vsyncadd [#allocation23], 0
          %s747 = sshll.u32 %s19, 4
          %s748 = int_to_ptr.hbm [resolvable:$true] %s747
          %s749 = sshll.u32 [#allocation24], 4
          %s750 = int_to_ptr.vmem [resolvable:$true] %s749
          %752 = dma.hbm_to_vmem [thread:$0]  %s748, 16, %s750, [#allocation23]
        $region84: #{tpu_custom_call.1} parent=11 // pred_fallthru
          _
        // Predicated region
        $region85: #{tpu_custom_call.1} parent=11 // pred_check
          %p753 = pneg %p474
        $region86: #{tpu_custom_call.1} parent=11 // pred_check_branch
          %755 = sbr.rel (%p753) target = $region88
        $region87: #{tpu_custom_call.1} parent=11 // pred_region
          _
        $region88: #{tpu_custom_call.1} parent=11 // pred_fallthru
          _
        // Predicated region
        $region89: #{tpu_custom_call.1} parent=11 // pred_check
          %p756 = pneg %p495
        $region90: #{tpu_custom_call.1} parent=11 // pred_check_branch
          %758 = sbr.rel (%p756) target = $region92
        $region91: #{tpu_custom_call.1} parent=11 // pred_region
          _
        $region92: #{tpu_custom_call.1} parent=11 // pred_fallthru
          _
        // Predicated region
        $region93: #{tpu_custom_call.1} parent=11 // pred_check
          %p759 = pneg %p516
        $region94: #{tpu_custom_call.1} parent=11 // pred_check_branch
          %761 = sbr.rel (%p759) target = $region96
        $region95: #{tpu_custom_call.1} parent=11 // pred_region
          %763 = vsyncadd [#allocation26], 0
          %s764 = sshll.u32 %s22, 4
          %s765 = int_to_ptr.hbm [resolvable:$true] %s764
          %s766 = sshll.u32 [#allocation25], 4
          %s767 = int_to_ptr.vmem [resolvable:$true] %s766
          %772 = dma.hbm_to_vmem [thread:$0]  %s765, 256, %s767, [#allocation26], 64, 64, 4
        $region96: #{tpu_custom_call.1} parent=11 // pred_fallthru
          _
        // Predicated region
        $region97: #{tpu_custom_call.1} parent=11 // pred_check
          %p773 = pneg %p537
        $region98: #{tpu_custom_call.1} parent=11 // pred_check_branch
          %775 = sbr.rel (%p773) target = $region100
        $region99: #{tpu_custom_call.1} parent=11 // pred_region
          _
        $region100: #{tpu_custom_call.1} parent=11 // pred_fallthru
          _
      $region12: #{tpu_custom_call.1} parent=5 // pred_fallthru
        _
      %p776 = scmp.lt.s32.totalorder %s49, 2
      // Predicated region
      $region101: #{tpu_custom_call.1} parent=5 // pred_check
        %p777 = pneg %p776
      $region102: #{tpu_custom_call.1} parent=5 // pred_check_branch
        %779 = sbr.rel (%p777) target = $region104
      $region103: #{tpu_custom_call.1} parent=5 // pred_region
        // Predicated region
        $region105: #{tpu_custom_call.1} parent=103 // pred_check
          %p780 = pneg %p69
        $region106: #{tpu_custom_call.1} parent=103 // pred_check_branch
          %782 = sbr.rel (%p780) target = $region108
        $region107: #{tpu_custom_call.1} parent=103 // pred_region
          %s783 = smul.u32 4, %s49
          %p784 = scmp.lt.s32.totalorder %s783, 7
          %s785 = scalar_select %p784, %s783, 7
          %s786 = smul.addr %s785, 4
          %s787 = scalar_lea.vmem %s1, %s786
          %s788 = smul.u32 4, %s49
        $region108: #{tpu_custom_call.1} parent=103 // pred_fallthru
          _
      $region104: #{tpu_custom_call.1} parent=5 // pred_fallthru
        _
      %p789 = scmp.le.s32.totalorder 1, %s49
      %p790 = scmp.lt.s32.totalorder %s49, 3
      %p791 = pnand %p789, %p790
      %p792 = pneg %p791
      // Predicated region
      $region109: #{tpu_custom_call.1} parent=5 // pred_check
        _
      $region110: #{tpu_custom_call.1} parent=5 // pred_check_branch
        %794 = sbr.rel (%p791) target = $region112
      $region111: #{tpu_custom_call.1} parent=5 // pred_region
        %s795 = ssub.s32 %s49, 1
        // Predicated region
        $region113: #{tpu_custom_call.1} parent=111 // pred_check
          %p796 = pneg %p117
        $region114: #{tpu_custom_call.1} parent=111 // pred_check_branch
          %798 = sbr.rel (%p796) target = $region116
        $region115: #{tpu_custom_call.1} parent=111 // pred_region
          %800 = dma.done [#allocation5], 16
        $region116: #{tpu_custom_call.1} parent=111 // pred_fallthru
          _
        // Predicated region
        $region117: #{tpu_custom_call.1} parent=111 // pred_check
          %p801 = pneg %p159
        $region118: #{tpu_custom_call.1} parent=111 // pred_check_branch
          %803 = sbr.rel (%p801) target = $region120
        $region119: #{tpu_custom_call.1} parent=111 // pred_region
          %805 = dma.done [#allocation8], 16
        $region120: #{tpu_custom_call.1} parent=111 // pred_fallthru
          _
        // Predicated region
        $region121: #{tpu_custom_call.1} parent=111 // pred_check
          %p806 = pneg %p201
        $region122: #{tpu_custom_call.1} parent=111 // pred_check_branch
          %808 = sbr.rel (%p806) target = $region124
        $region123: #{tpu_custom_call.1} parent=111 // pred_region
          %810 = dma.done [#allocation8], 16
        $region124: #{tpu_custom_call.1} parent=111 // pred_fallthru
          _
        // Predicated region
        $region125: #{tpu_custom_call.1} parent=111 // pred_check
          %p811 = pneg %p243
        $region126: #{tpu_custom_call.1} parent=111 // pred_check_branch
          %813 = sbr.rel (%p811) target = $region128
        $region127: #{tpu_custom_call.1} parent=111 // pred_region
          %815 = dma.done [#allocation11], 16
        $region128: #{tpu_custom_call.1} parent=111 // pred_fallthru
          _
        // Predicated region
        $region129: #{tpu_custom_call.1} parent=111 // pred_check
          %p816 = pneg %p264
        $region130: #{tpu_custom_call.1} parent=111 // pred_check_branch
          %818 = sbr.rel (%p816) target = $region132
        $region131: #{tpu_custom_call.1} parent=111 // pred_region
          %820 = dma.done [#allocation11], 256
        $region132: #{tpu_custom_call.1} parent=111 // pred_fallthru
          _
        // Predicated region
        $region133: #{tpu_custom_call.1} parent=111 // pred_check
          %p821 = pneg %p285
        $region134: #{tpu_custom_call.1} parent=111 // pred_check_branch
          %823 = sbr.rel (%p821) target = $region136
        $region135: #{tpu_custom_call.1} parent=111 // pred_region
          %825 = dma.done [#allocation14], 16
        $region136: #{tpu_custom_call.1} parent=111 // pred_fallthru
          _
        // Predicated region
        $region137: #{tpu_custom_call.1} parent=111 // pred_check
          %p826 = pneg %p306
        $region138: #{tpu_custom_call.1} parent=111 // pred_check_branch
          %828 = sbr.rel (%p826) target = $region140
        $region139: #{tpu_custom_call.1} parent=111 // pred_region
          %830 = dma.done [#allocation14], 16
        $region140: #{tpu_custom_call.1} parent=111 // pred_fallthru
          _
        // Predicated region
        $region141: #{tpu_custom_call.1} parent=111 // pred_check
          %p831 = pneg %p327
        $region142: #{tpu_custom_call.1} parent=111 // pred_check_branch
          %833 = sbr.rel (%p831) target = $region144
        $region143: #{tpu_custom_call.1} parent=111 // pred_region
          %835 = dma.done [#allocation17], 16
        $region144: #{tpu_custom_call.1} parent=111 // pred_fallthru
          _
        // Predicated region
        $region145: #{tpu_custom_call.1} parent=111 // pred_check
          %p836 = pneg %p348
        $region146: #{tpu_custom_call.1} parent=111 // pred_check_branch
          %838 = sbr.rel (%p836) target = $region148
        $region147: #{tpu_custom_call.1} parent=111 // pred_region
          %840 = dma.done [#allocation17], 256
        $region148: #{tpu_custom_call.1} parent=111 // pred_fallthru
          _
        // Predicated region
        $region149: #{tpu_custom_call.1} parent=111 // pred_check
          %p841 = pneg %p369
        $region150: #{tpu_custom_call.1} parent=111 // pred_check_branch
          %843 = sbr.rel (%p841) target = $region152
        $region151: #{tpu_custom_call.1} parent=111 // pred_region
          %845 = dma.done [#allocation20], 16
        $region152: #{tpu_custom_call.1} parent=111 // pred_fallthru
          _
        // Predicated region
        $region153: #{tpu_custom_call.1} parent=111 // pred_check
          %p846 = pneg %p411
        $region154: #{tpu_custom_call.1} parent=111 // pred_check_branch
          %848 = sbr.rel (%p846) target = $region156
        $region155: #{tpu_custom_call.1} parent=111 // pred_region
          %850 = dma.done [#allocation20], 16
        $region156: #{tpu_custom_call.1} parent=111 // pred_fallthru
          _
        // Predicated region
        $region157: #{tpu_custom_call.1} parent=111 // pred_check
          %p851 = pneg %p432
        $region158: #{tpu_custom_call.1} parent=111 // pred_check_branch
          %853 = sbr.rel (%p851) target = $region160
        $region159: #{tpu_custom_call.1} parent=111 // pred_region
          %855 = dma.done [#allocation23], 16
        $region160: #{tpu_custom_call.1} parent=111 // pred_fallthru
          _
        // Predicated region
        $region161: #{tpu_custom_call.1} parent=111 // pred_check
          %p856 = pneg %p453
        $region162: #{tpu_custom_call.1} parent=111 // pred_check_branch
          %858 = sbr.rel (%p856) target = $region164
        $region163: #{tpu_custom_call.1} parent=111 // pred_region
          %860 = dma.done [#allocation23], 16
        $region164: #{tpu_custom_call.1} parent=111 // pred_fallthru
          _
        // Predicated region
        $region165: #{tpu_custom_call.1} parent=111 // pred_check
          %p861 = pneg %p516
        $region166: #{tpu_custom_call.1} parent=111 // pred_check_branch
          %863 = sbr.rel (%p861) target = $region168
        $region167: #{tpu_custom_call.1} parent=111 // pred_region
          %865 = dma.done [#allocation26], 256
        $region168: #{tpu_custom_call.1} parent=111 // pred_fallthru
          _
        %s866 = smul.u32 4, %s54
        %p867 = scmp.lt.s32.totalorder %s866, 7
        %s868 = scalar_select %p867, %s866, 7
        %s869 = smul.addr %s868, 4
        %s870 = scalar_lea.vmem %s1, %s869
        %p871 = pneg %p75
        %p872 = pneg %p72
        %p873 = pneg %p96
        %p874 = pneg %p93
        %p875 = pneg %p117
        %p876 = pneg %p114
        %p877 = pneg %p138
        %p878 = pneg %p135
        %p879 = pneg %p159
        %p880 = pneg %p156
        %p881 = pneg %p180
        %p882 = pneg %p177
        %p883 = pneg %p201
        %p884 = pneg %p198
        %p885 = pneg %p222
        %p886 = pneg %p219
        %p887 = pneg %p243
        %p888 = pneg %p240
        %p889 = pneg %p264
        %p890 = pneg %p261
        %p891 = pneg %p285
        %p892 = pneg %p282
        %p893 = pneg %p306
        %p894 = pneg %p303
        %p895 = pneg %p327
        %p896 = pneg %p324
        %p897 = pneg %p348
        %p898 = pneg %p345
        %p899 = pneg %p369
        %p900 = pneg %p366
        %p901 = pneg %p390
        %p902 = pneg %p387
        %p903 = pneg %p411
        %p904 = pneg %p408
        %p905 = pneg %p432
        %p906 = pneg %p429
        %p907 = pneg %p453
        %p908 = pneg %p450
        %p909 = pneg %p474
        %p910 = pneg %p471
        %p911 = pneg %p495
        %p912 = pneg %p492
        %p913 = pneg %p516
        %p914 = pneg %p513
        %p915 = pneg %p537
        %p916 = pneg %p534
        %p917 = pneg %p563
        %p918 = pneg %p560
        %s919 = sand.u32 %s550, 1
        %s920 = scalar_lea.sflag [#allocation6], %s919
        %s921 = sand.u32 %s550, 1
        %s922 = smul.addr %s921, 4
        %s923 = scalar_lea.vmem [#allocation27], %s922
        %s924 = smul.u32 4, %s54
        %p925 = scmp.lt.s32.totalorder %s924, 7
        %s926 = scalar_select %p925, %s924, 7
        %s927 = smul.addr %s926, 4
        %s928 = scalar_lea.vmem %s1, %s927
        %s929 = smul.u32 4, %s54
        %v931 = vlaneseq
        %v932 = vshrl.u32 %v931, 7
        %v933 = vlaneseq
        %v934 = vand.u32 %v933, 127
        %vm935 = vcmp.eq.s32.totalorder %v932, 0
        %s936 = smul.u32 %s54, 4
        %s937 = sld [smem:[#allocation3 + %s936]]
        %v938 = vstv %s937
        %v939 = vsel %vm935, %v938, 0
        %vm940 = vcmp.eq.s32.totalorder %v932, 1
        %s941 = sadd.s32 %s936, 1
        %s942 = sld [smem:[#allocation3 + %s941]]
        %v943 = vstv %s942
        %v944 = vsel %vm940, %v943, %v939
        %vm945 = vcmp.eq.s32.totalorder %v932, 2
        %s946 = sadd.s32 %s936, 2
        %s947 = sld [smem:[#allocation3 + %s946]]
        %v948 = vstv %s947
        %v949 = vsel %vm945, %v948, %v944
        %vm950 = vcmp.eq.s32.totalorder %v932, 3
        %s951 = sadd.s32 %s936, 3
        %s952 = sld [smem:[#allocation3 + %s951]]
        %v953 = vstv %s952
        %v954 = vsel %vm950, %v953, %v949
        %vm955 = vcmp.lt.s32.totalorder %v934, %v954
        %v956 = vsel %vm955, 0.0, -1e+09
        %v958 = vrot.slane %v956, 1
        %v959 = vrot.slane %v956, 2
        %v960 = vrot.slane %v956, 3
        %v961 = vperm.slane %v956, 0
        %v962 = vperm.slane %v958, 0
        %v963 = vperm.slane %v959, 0
        %v964 = vperm.slane %v960, 0
        %v969 = vld [vmem:[%s928] sm:$0xf]
        %v970 = vld [vmem:[%s928 + $0x4] sm:$0xf]
        %v971 = vld [vmem:[%s928 + $0x8] sm:$0xf]
        %v972 = vld [vmem:[%s928 + $0xc] sm:$0xf]
        %v973 = vunpack.c.l.bf16 %v969
        %v974 = vunpack.c.l.bf16 %v970
        %v975 = vunpack.c.l.bf16 %v971
        %v976 = vunpack.c.l.bf16 %v972
        %vm977 = vcmask 261120
        %v978 = vsel %vm977, %v973, 0.0
        %979 = vadd.xlane.f32.xlu0 %v978
        %v980 = vpop.xlane.xlu0 %979
        %v981 = vsel %vm977, %v974, 0.0
        %982 = vadd.xlane.f32.xlu0 %v981
        %v983 = vpop.xlane.xlu0 %982
        %v984 = vsel %vm977, %v975, 0.0
        %985 = vadd.xlane.f32.xlu0 %v984
        %v986 = vpop.xlane.xlu0 %985
        %v987 = vsel %vm977, %v976, 0.0
        %988 = vadd.xlane.f32.xlu0 %v987
        %v989 = vpop.xlane.xlu0 %988
        %v990 = vrcp.pop 32.0
        %v991 = vmul.f32 32.0, %v990
        %v992 = vsub.f32 1.0, %v991
        %v993 = vmul.f32 %v990, %v992
        %v994 = vadd.f32 %v990, %v993
        %vm995 = vweird.f32 %v990
        %v996 = vsel %vm995, %v990, %v994
        %v997 = vmul.f32 %v980, %v996
        %v998 = vmul.f32 %v983, %v996
        %v999 = vmul.f32 %v986, %v996
        %v1000 = vmul.f32 %v989, %v996
        %v1001 = vsub.f32 %v973, %v997
        %v1002 = vsub.f32 %v974, %v998
        %v1003 = vsub.f32 %v975, %v999
        %v1004 = vsub.f32 %v976, %v1000
        %v1005 = vmul.f32 %v1001, %v1001
        %v1006 = vmul.f32 %v1002, %v1002
        %v1007 = vmul.f32 %v1003, %v1003
        %v1008 = vmul.f32 %v1004, %v1004
        %v1009 = vsel %vm977, %v1005, 0.0
        %1010 = vadd.xlane.f32.xlu0 %v1009
        %v1011 = vpop.xlane.xlu0 %1010
        %v1012 = vsel %vm977, %v1006, 0.0
        %1013 = vadd.xlane.f32.xlu0 %v1012
        %v1014 = vpop.xlane.xlu0 %1013
        %v1015 = vsel %vm977, %v1007, 0.0
        %1016 = vadd.xlane.f32.xlu0 %v1015
        %v1017 = vpop.xlane.xlu0 %1016
        %v1018 = vsel %vm977, %v1008, 0.0
        %1019 = vadd.xlane.f32.xlu0 %v1018
        %v1020 = vpop.xlane.xlu0 %1019
        %v1021 = vmul.f32 %v1011, %v996
        %v1022 = vmul.f32 %v1014, %v996
        %v1023 = vmul.f32 %v1017, %v996
        %v1024 = vmul.f32 %v1020, %v996
        %v1025 = vadd.f32 %v1021, 1e-12
        %v1026 = vadd.f32 %v1022, 1e-12
        %v1027 = vadd.f32 %v1023, 1e-12
        %v1028 = vadd.f32 %v1024, 1e-12
        %v1029 = vrsqrt.pop %v1025
        %v1030 = vmul.f32 %v1029, %v1025
        %v1031 = vmul.f32 %v1030, %v1029
        %v1032 = vmul.f32 0.5, %v1031
        %v1033 = vsub.f32 1.5, %v1032
        %v1034 = vmul.f32 %v1029, %v1033
        %vm1035 = vweird.f32 %v1025
        %vm1036 = vweird.f32 %v1029
        %vm1037 = vmor %vm1035, %vm1036
        %v1038 = vsel %vm1037, %v1029, %v1034
        %v1039 = vrsqrt.pop %v1026
        %v1040 = vmul.f32 %v1039, %v1026
        %v1041 = vmul.f32 %v1040, %v1039
        %v1042 = vmul.f32 0.5, %v1041
        %v1043 = vsub.f32 1.5, %v1042
        %v1044 = vmul.f32 %v1039, %v1043
        %vm1045 = vweird.f32 %v1026
        %vm1046 = vweird.f32 %v1039
        %vm1047 = vmor %vm1045, %vm1046
        %v1048 = vsel %vm1047, %v1039, %v1044
        %v1049 = vrsqrt.pop %v1027
        %v1050 = vmul.f32 %v1049, %v1027
        %v1051 = vmul.f32 %v1050, %v1049
        %v1052 = vmul.f32 0.5, %v1051
        %v1053 = vsub.f32 1.5, %v1052
        %v1054 = vmul.f32 %v1049, %v1053
        %vm1055 = vweird.f32 %v1027
        %vm1056 = vweird.f32 %v1049
        %vm1057 = vmor %vm1055, %vm1056
        %v1058 = vsel %vm1057, %v1049, %v1054
        %v1059 = vrsqrt.pop %v1028
        %v1060 = vmul.f32 %v1059, %v1028
        %v1061 = vmul.f32 %v1060, %v1059
        %v1062 = vmul.f32 0.5, %v1061
        %v1063 = vsub.f32 1.5, %v1062
        %v1064 = vmul.f32 %v1059, %v1063
        %vm1065 = vweird.f32 %v1028
        %vm1066 = vweird.f32 %v1059
        %vm1067 = vmor %vm1065, %vm1066
        %v1068 = vsel %vm1067, %v1059, %v1064
        %v1069 = vmul.f32 %v1001, %v1038
        %v1070 = vmul.f32 %v1002, %v1048
        %v1071 = vmul.f32 %v1003, %v1058
        %v1072 = vmul.f32 %v1004, %v1068
        %v1073 = vld [vmem:[%s2] sm:$0x1]
        %v1075 = vperm.slane %v1073, 0
        %v1077 = vmul.f32 %v1069, %v1075
        %v1078 = vmul.f32 %v1070, %v1075
        %v1079 = vmul.f32 %v1071, %v1075
        %v1080 = vmul.f32 %v1072, %v1075
        %v1081 = vld [vmem:[#allocation4] sm:$0x1]
        %v1083 = vperm.slane %v1081, 0
        %v1085 = vadd.f32 %v1077, %v1083
        %v1086 = vadd.f32 %v1078, %v1083
        %v1087 = vadd.f32 %v1079, %v1083
        %v1088 = vadd.f32 %v1080, %v1083
        %v1089 = vpack.c.bf16 %v1086, %v1085
        %v1090 = vpack.c.bf16 %v1088, %v1087
        %v1091 = vld [vmem:[%s4] sm:$0xf]
        %v1092 = vld [vmem:[%s4 + $0x4] sm:$0xf]
        %v1093 = vld [vmem:[%s4 + $0x8] sm:$0xf]
        %v1094 = vld [vmem:[%s4 + $0xc] sm:$0xf]
        %v1095 = vld [vmem:[#allocation7] sm:$0x1]
        %v1097 = vperm.slane %v1095, 0
        %v1103 = vunpack.c.l.b16 %v1091
        %v1104 = vunpack.c.l.b16 %v1092
        %v1105 = vunpack.c.l.b16 %v1093
        %v1106 = vunpack.c.l.b16 %v1094
        %v1107 = vpack.c.b16 %v1104, %v1103
        %v1108 = vpack.c.b16 %v1106, %v1105
        %v1112 = vsel %vm977, %v1089, 0
        %v1115 = vsel %vm977, %v1090, 0
        %1117 = vmatpush.bf16.msra.mxu0 0
        %1118 = vmatpush.bf16.msra.mxu0 0
        %1119 = vmatpush.bf16.msra.mxu0 0
        %1120 = vmatpush.bf16.msra.mxu0 0
        %1121 = vmatpush.bf16.msra.mxu0 0
        %1122 = vmatpush.bf16.msra.mxu0 0
        %1123 = vmatpush.bf16.msra.mxu0 %v1108
        %1124 = vmatpush.bf16.msra.mxu0 %v1107
        %1125 = vmatmul.bf16.gmra.mxu0 %v1112
        %v1126 = vpop.f32.mrf.mxu0
        %v1127 = vadd.f32 %v1097, %v1126
        %v1128 = vpop.f32.mrf.mxu0
        %v1129 = vadd.f32 %v1097, %v1128
        %1130 = vmatmul.bf16.gmra.mxu0 %v1115
        %v1131 = vpop.f32.mrf.mxu0
        %v1132 = vadd.f32 %v1097, %v1131
        %v1133 = vpop.f32.mrf.mxu0
        %v1134 = vadd.f32 %v1097, %v1133
        %1135 = vdwg.mxu0
        %v1136 = vld [vmem:[%s6] sm:$0xf]
        %v1137 = vld [vmem:[%s6 + $0x4] sm:$0xf]
        %v1138 = vld [vmem:[%s6 + $0x8] sm:$0xf]
        %v1139 = vld [vmem:[%s6 + $0xc] sm:$0xf]
        %v1140 = vld [vmem:[#allocation9] sm:$0x1]
        %v1142 = vperm.slane %v1140, 0
        %v1148 = vunpack.c.l.b16 %v1136
        %v1149 = vunpack.c.l.b16 %v1137
        %v1150 = vunpack.c.l.b16 %v1138
        %v1151 = vunpack.c.l.b16 %v1139
        %v1152 = vpack.c.b16 %v1149, %v1148
        %v1153 = vpack.c.b16 %v1151, %v1150
        %1156 = vmatpush.bf16.msra.mxu0 0
        %1157 = vmatpush.bf16.msra.mxu0 0
        %1158 = vmatpush.bf16.msra.mxu0 0
        %1159 = vmatpush.bf16.msra.mxu0 0
        %1160 = vmatpush.bf16.msra.mxu0 0
        %1161 = vmatpush.bf16.msra.mxu0 0
        %1162 = vmatpush.bf16.msra.mxu0 %v1153
        %1163 = vmatpush.bf16.msra.mxu0 %v1152
        %1164 = vmatmul.bf16.gmra.mxu0 %v1112
        %v1165 = vpop.f32.mrf.mxu0
        %v1166 = vadd.f32 %v1142, %v1165
        %v1167 = vpop.f32.mrf.mxu0
        %v1168 = vadd.f32 %v1142, %v1167
        %1169 = vmatmul.bf16.gmra.mxu0 %v1115
        %v1170 = vpop.f32.mrf.mxu0
        %v1171 = vadd.f32 %v1142, %v1170
        %v1172 = vpop.f32.mrf.mxu0
        %v1173 = vadd.f32 %v1142, %v1172
        %1174 = vdwg.mxu0
        %v1175 = vld [vmem:[%s8] sm:$0xf]
        %v1176 = vld [vmem:[%s8 + $0x4] sm:$0xf]
        %v1177 = vld [vmem:[%s8 + $0x8] sm:$0xf]
        %v1178 = vld [vmem:[%s8 + $0xc] sm:$0xf]
        %v1179 = vld [vmem:[#allocation10] sm:$0x1]
        %v1181 = vperm.slane %v1179, 0
        %v1187 = vunpack.c.l.b16 %v1175
        %v1188 = vunpack.c.l.b16 %v1176
        %v1189 = vunpack.c.l.b16 %v1177
        %v1190 = vunpack.c.l.b16 %v1178
        %v1191 = vpack.c.b16 %v1188, %v1187
        %v1192 = vpack.c.b16 %v1190, %v1189
        %1195 = vmatpush.bf16.msra.mxu0 0
        %1196 = vmatpush.bf16.msra.mxu0 0
        %1197 = vmatpush.bf16.msra.mxu0 0
        %1198 = vmatpush.bf16.msra.mxu0 0
        %1199 = vmatpush.bf16.msra.mxu0 0
        %1200 = vmatpush.bf16.msra.mxu0 0
        %1201 = vmatpush.bf16.msra.mxu0 %v1192
        %1202 = vmatpush.bf16.msra.mxu0 %v1191
        %1203 = vmatmul.bf16.gmra.mxu0 %v1112
        %v1204 = vpop.f32.mrf.mxu0
        %v1205 = vadd.f32 %v1181, %v1204
        %v1206 = vpop.f32.mrf.mxu0
        %v1207 = vadd.f32 %v1181, %v1206
        %1208 = vmatmul.bf16.gmra.mxu0 %v1115
        %v1209 = vpop.f32.mrf.mxu0
        %v1210 = vadd.f32 %v1181, %v1209
        %v1211 = vpop.f32.mrf.mxu0
        %v1212 = vadd.f32 %v1181, %v1211
        %1213 = vdwg.mxu0
        %v1214 = vpack.c.bf16 %v1127, %v1127
        %v1215 = vpack.c.bf16 %v1129, %v1129
        %v1216 = vpack.c.bf16 %v1132, %v1132
        %v1217 = vpack.c.bf16 %v1134, %v1134
        %v1218 = vpack.c.bf16 %v1166, %v1166
        %v1219 = vpack.c.bf16 %v1168, %v1168
        %v1220 = vpack.c.bf16 %v1171, %v1171
        %v1221 = vpack.c.bf16 %v1173, %v1173
        %v1222 = vpack.c.bf16 %v1205, %v1205
        %v1223 = vpack.c.bf16 %v1207, %v1207
        %v1224 = vpack.c.bf16 %v1210, %v1210
        %v1225 = vpack.c.bf16 %v1212, %v1212
        %vm1226 = vcmask 130048
        %v1228 = vsel %vm1226, %v1214, 0
        %v1231 = vsel %vm1226, %v1218, 0
        %1233 = vmatpush.bf16.xpose.msra.mxu0 0
        %1234 = vmatpush.bf16.xpose.msra.mxu0 0
        %1235 = vmatpush.bf16.xpose.msra.mxu0 0
        %1236 = vmatpush.bf16.xpose.msra.mxu0 0
        %1237 = vmatpush.bf16.xpose.msra.mxu0 0
        %1238 = vmatpush.bf16.xpose.msra.mxu0 0
        %1239 = vmatpush.bf16.xpose.msra.mxu0 0
        %1240 = vmatpush.bf16.xpose.msra.mxu0 %v1231
        %1241 = vmatmul.bf16.gmra.mxu0 %v1228
        %v1242 = vpop.f32.mrf.mxu0
        %v1243 = vadd.f32 0.0, %v1242
        %v1244 = vpop.f32.mrf.mxu0
        %1245 = vdwg.mxu0
        %v1247 = vsel %vm1226, %v1215, 0
        %v1250 = vsel %vm1226, %v1219, 0
        %1252 = vmatpush.bf16.xpose.msra.mxu0 0
        %1253 = vmatpush.bf16.xpose.msra.mxu0 0
        %1254 = vmatpush.bf16.xpose.msra.mxu0 0
        %1255 = vmatpush.bf16.xpose.msra.mxu0 0
        %1256 = vmatpush.bf16.xpose.msra.mxu0 0
        %1257 = vmatpush.bf16.xpose.msra.mxu0 0
        %1258 = vmatpush.bf16.xpose.msra.mxu0 0
        %1259 = vmatpush.bf16.xpose.msra.mxu0 %v1250
        %1260 = vmatmul.bf16.gmra.mxu0 %v1247
        %v1261 = vpop.f32.mrf.mxu0
        %v1262 = vadd.f32 0.0, %v1261
        %v1263 = vpop.f32.mrf.mxu0
        %1264 = vdwg.mxu0
        %v1266 = vsel %vm1226, %v1216, 0
        %v1269 = vsel %vm1226, %v1220, 0
        %1271 = vmatpush.bf16.xpose.msra.mxu0 0
        %1272 = vmatpush.bf16.xpose.msra.mxu0 0
        %1273 = vmatpush.bf16.xpose.msra.mxu0 0
        %1274 = vmatpush.bf16.xpose.msra.mxu0 0
        %1275 = vmatpush.bf16.xpose.msra.mxu0 0
        %1276 = vmatpush.bf16.xpose.msra.mxu0 0
        %1277 = vmatpush.bf16.xpose.msra.mxu0 0
        %1278 = vmatpush.bf16.xpose.msra.mxu0 %v1269
        %1279 = vmatmul.bf16.gmra.mxu0 %v1266
        %v1280 = vpop.f32.mrf.mxu0
        %v1281 = vadd.f32 0.0, %v1280
        %v1282 = vpop.f32.mrf.mxu0
        %1283 = vdwg.mxu0
        %v1285 = vsel %vm1226, %v1217, 0
        %v1288 = vsel %vm1226, %v1221, 0
        %1290 = vmatpush.bf16.xpose.msra.mxu0 0
        %1291 = vmatpush.bf16.xpose.msra.mxu0 0
        %1292 = vmatpush.bf16.xpose.msra.mxu0 0
        %1293 = vmatpush.bf16.xpose.msra.mxu0 0
        %1294 = vmatpush.bf16.xpose.msra.mxu0 0
        %1295 = vmatpush.bf16.xpose.msra.mxu0 0
        %1296 = vmatpush.bf16.xpose.msra.mxu0 0
        %1297 = vmatpush.bf16.xpose.msra.mxu0 %v1288
        %1298 = vmatmul.bf16.gmra.mxu0 %v1285
        %v1299 = vpop.f32.mrf.mxu0
        %v1300 = vadd.f32 0.0, %v1299
        %v1301 = vpop.f32.mrf.mxu0
        %1302 = vdwg.mxu0
        %v1303 = vmul.f32 %v1243, 0.25
        %v1304 = vmul.f32 %v1262, 0.25
        %v1305 = vmul.f32 %v1281, 0.25
        %v1306 = vmul.f32 %v1300, 0.25
        %v1307 = vadd.f32 %v1303, %v961
        %v1308 = vadd.f32 %v1304, %v962
        %v1309 = vadd.f32 %v1305, %v963
        %v1310 = vadd.f32 %v1306, %v964
        %vm1311 = vcmask 64512
        %v1312 = vsel %vm1311, %v1307, -inf
        %1313 = vmax.xlane.f32.xlu0 %v1312
        %v1314 = vpop.xlane.xlu0 %1313
        %v1315 = vsel %vm1311, %v1308, -inf
        %1316 = vmax.xlane.f32.xlu0 %v1315
        %v1317 = vpop.xlane.xlu0 %1316
        %v1318 = vsel %vm1311, %v1309, -inf
        %1319 = vmax.xlane.f32.xlu0 %v1318
        %v1320 = vpop.xlane.xlu0 %1319
        %v1321 = vsel %vm1311, %v1310, -inf
        %1322 = vmax.xlane.f32.xlu0 %v1321
        %v1323 = vpop.xlane.xlu0 %1322
        %v1324 = vsub.f32 %v1307, %v1314
        %v1325 = vsub.f32 %v1308, %v1317
        %v1326 = vsub.f32 %v1309, %v1320
        %v1327 = vsub.f32 %v1310, %v1323
        %v1328 = vmul.f32 %v1324, 1.442695
        %v1329 = vpow.pop %v1328
        %v1330 = vmul.f32 %v1325, 1.442695
        %v1331 = vpow.pop %v1330
        %v1332 = vmul.f32 %v1326, 1.442695
        %v1333 = vpow.pop %v1332
        %v1334 = vmul.f32 %v1327, 1.442695
        %v1335 = vpow.pop %v1334
        %v1336 = vsel %vm1311, %v1329, 0.0
        %1337 = vadd.xlane.f32.xlu0 %v1336
        %v1338 = vpop.xlane.xlu0 %1337
        %v1339 = vsel %vm1311, %v1331, 0.0
        %1340 = vadd.xlane.f32.xlu0 %v1339
        %v1341 = vpop.xlane.xlu0 %1340
        %v1342 = vsel %vm1311, %v1333, 0.0
        %1343 = vadd.xlane.f32.xlu0 %v1342
        %v1344 = vpop.xlane.xlu0 %1343
        %v1345 = vsel %vm1311, %v1335, 0.0
        %1346 = vadd.xlane.f32.xlu0 %v1345
        %v1347 = vpop.xlane.xlu0 %1346
        %v1348 = vrcp.pop %v1338
        %v1349 = vrcp.pop %v1341
        %v1350 = vrcp.pop %v1344
        %v1351 = vrcp.pop %v1347
        %v1352 = vmul.f32 %v1329, %v1348
        %v1353 = vmul.f32 %v1331, %v1349
        %v1354 = vmul.f32 %v1333, %v1350
        %v1355 = vmul.f32 %v1335, %v1351
        %v1356 = vpack.c.bf16 %v1352, %v1352
        %v1357 = vpack.c.bf16 %v1353, %v1353
        %v1358 = vpack.c.bf16 %v1354, %v1354
        %v1359 = vpack.c.bf16 %v1355, %v1355
        %v1361 = vsel %vm1311, %v1356, 0
        %vm1363 = vcmask 1043456
        %v1365 = vsel %vm1363, %v1222, 0
        %1367 = vmatpush.bf16.msra.mxu0 0
        %1368 = vmatpush.bf16.msra.mxu0 0
        %1369 = vmatpush.bf16.msra.mxu0 0
        %1370 = vmatpush.bf16.msra.mxu0 0
        %1371 = vmatpush.bf16.msra.mxu0 0
        %1372 = vmatpush.bf16.msra.mxu0 0
        %1373 = vmatpush.bf16.msra.mxu0 0
        %1374 = vmatpush.bf16.msra.mxu0 %v1365
        %1375 = vmatmul.bf16.gmra.mxu0 %v1361
        %v1376 = vpop.f32.mrf.mxu0
        %v1377 = vadd.f32 0.0, %v1376
        %v1378 = vpop.f32.mrf.mxu0
        %1379 = vdwg.mxu0
        %v1381 = vsel %vm1311, %v1357, 0
        %v1384 = vsel %vm1363, %v1223, 0
        %1386 = vmatpush.bf16.msra.mxu0 0
        %1387 = vmatpush.bf16.msra.mxu0 0
        %1388 = vmatpush.bf16.msra.mxu0 0
        %1389 = vmatpush.bf16.msra.mxu0 0
        %1390 = vmatpush.bf16.msra.mxu0 0
        %1391 = vmatpush.bf16.msra.mxu0 0
        %1392 = vmatpush.bf16.msra.mxu0 0
        %1393 = vmatpush.bf16.msra.mxu0 %v1384
        %1394 = vmatmul.bf16.gmra.mxu0 %v1381
        %v1395 = vpop.f32.mrf.mxu0
        %v1396 = vadd.f32 0.0, %v1395
        %v1397 = vpop.f32.mrf.mxu0
        %1398 = vdwg.mxu0
        %v1400 = vsel %vm1311, %v1358, 0
        %v1403 = vsel %vm1363, %v1224, 0
        %1405 = vmatpush.bf16.msra.mxu0 0
        %1406 = vmatpush.bf16.msra.mxu0 0
        %1407 = vmatpush.bf16.msra.mxu0 0
        %1408 = vmatpush.bf16.msra.mxu0 0
        %1409 = vmatpush.bf16.msra.mxu0 0
        %1410 = vmatpush.bf16.msra.mxu0 0
        %1411 = vmatpush.bf16.msra.mxu0 0
        %1412 = vmatpush.bf16.msra.mxu0 %v1403
        %1413 = vmatmul.bf16.gmra.mxu0 %v1400
        %v1414 = vpop.f32.mrf.mxu0
        %v1415 = vadd.f32 0.0, %v1414
        %v1416 = vpop.f32.mrf.mxu0
        %1417 = vdwg.mxu0
        %v1419 = vsel %vm1311, %v1359, 0
        %v1422 = vsel %vm1363, %v1225, 0
        %1424 = vmatpush.bf16.msra.mxu0 0
        %1425 = vmatpush.bf16.msra.mxu0 0
        %1426 = vmatpush.bf16.msra.mxu0 0
        %1427 = vmatpush.bf16.msra.mxu0 0
        %1428 = vmatpush.bf16.msra.mxu0 0
        %1429 = vmatpush.bf16.msra.mxu0 0
        %1430 = vmatpush.bf16.msra.mxu0 0
        %1431 = vmatpush.bf16.msra.mxu0 %v1422
        %1432 = vmatmul.bf16.gmra.mxu0 %v1419
        %v1433 = vpop.f32.mrf.mxu0
        %v1434 = vadd.f32 0.0, %v1433
        %v1435 = vpop.f32.mrf.mxu0
        %1436 = vdwg.mxu0
        %v1438 = vunpack.c.l.b16 %v1214
        %v1439 = vpack.c.b16 %v1438, %v1438
        %1440 = vrot.lane.b32.xlu0 %v1439, 112
        %v1441 = vpop.permute.xlu0 %1440
        %v1443 = vunpack.c.l.b16 %v1218
        %v1444 = vpack.c.b16 %v1443, %v1443
        %1445 = vrot.lane.b32.xlu0 %v1444, 112
        %v1446 = vpop.permute.xlu0 %1445
        %v1448 = vsel %vm1226, %v1441, 0
        %v1451 = vsel %vm1226, %v1446, 0
        %1453 = vmatpush.bf16.xpose.msra.mxu0 0
        %1454 = vmatpush.bf16.xpose.msra.mxu0 0
        %1455 = vmatpush.bf16.xpose.msra.mxu0 0
        %1456 = vmatpush.bf16.xpose.msra.mxu0 0
        %1457 = vmatpush.bf16.xpose.msra.mxu0 0
        %1458 = vmatpush.bf16.xpose.msra.mxu0 0
        %1459 = vmatpush.bf16.xpose.msra.mxu0 0
        %1460 = vmatpush.bf16.xpose.msra.mxu0 %v1451
        %1461 = vmatmul.bf16.gmra.mxu0 %v1448
        %v1462 = vpop.f32.mrf.mxu0
        %v1463 = vadd.f32 0.0, %v1462
        %v1464 = vpop.f32.mrf.mxu0
        %1465 = vdwg.mxu0
        %v1467 = vunpack.c.l.b16 %v1215
        %v1468 = vpack.c.b16 %v1467, %v1467
        %1469 = vrot.lane.b32.xlu0 %v1468, 112
        %v1470 = vpop.permute.xlu0 %1469
        %v1472 = vunpack.c.l.b16 %v1219
        %v1473 = vpack.c.b16 %v1472, %v1472
        %1474 = vrot.lane.b32.xlu0 %v1473, 112
        %v1475 = vpop.permute.xlu0 %1474
        %v1477 = vsel %vm1226, %v1470, 0
        %v1480 = vsel %vm1226, %v1475, 0
        %1482 = vmatpush.bf16.xpose.msra.mxu0 0
        %1483 = vmatpush.bf16.xpose.msra.mxu0 0
        %1484 = vmatpush.bf16.xpose.msra.mxu0 0
        %1485 = vmatpush.bf16.xpose.msra.mxu0 0
        %1486 = vmatpush.bf16.xpose.msra.mxu0 0
        %1487 = vmatpush.bf16.xpose.msra.mxu0 0
        %1488 = vmatpush.bf16.xpose.msra.mxu0 0
        %1489 = vmatpush.bf16.xpose.msra.mxu0 %v1480
        %1490 = vmatmul.bf16.gmra.mxu0 %v1477
        %v1491 = vpop.f32.mrf.mxu0
        %v1492 = vadd.f32 0.0, %v1491
        %v1493 = vpop.f32.mrf.mxu0
        %1494 = vdwg.mxu0
        %v1496 = vunpack.c.l.b16 %v1216
        %v1497 = vpack.c.b16 %v1496, %v1496
        %1498 = vrot.lane.b32.xlu0 %v1497, 112
        %v1499 = vpop.permute.xlu0 %1498
        %v1501 = vunpack.c.l.b16 %v1220
        %v1502 = vpack.c.b16 %v1501, %v1501
        %1503 = vrot.lane.b32.xlu0 %v1502, 112
        %v1504 = vpop.permute.xlu0 %1503
        %v1506 = vsel %vm1226, %v1499, 0
        %v1509 = vsel %vm1226, %v1504, 0
        %1511 = vmatpush.bf16.xpose.msra.mxu0 0
        %1512 = vmatpush.bf16.xpose.msra.mxu0 0
        %1513 = vmatpush.bf16.xpose.msra.mxu0 0
        %1514 = vmatpush.bf16.xpose.msra.mxu0 0
        %1515 = vmatpush.bf16.xpose.msra.mxu0 0
        %1516 = vmatpush.bf16.xpose.msra.mxu0 0
        %1517 = vmatpush.bf16.xpose.msra.mxu0 0
        %1518 = vmatpush.bf16.xpose.msra.mxu0 %v1509
        %1519 = vmatmul.bf16.gmra.mxu0 %v1506
        %v1520 = vpop.f32.mrf.mxu0
        %v1521 = vadd.f32 0.0, %v1520
        %v1522 = vpop.f32.mrf.mxu0
        %1523 = vdwg.mxu0
        %v1525 = vunpack.c.l.b16 %v1217
        %v1526 = vpack.c.b16 %v1525, %v1525
        %1527 = vrot.lane.b32.xlu0 %v1526, 112
        %v1528 = vpop.permute.xlu0 %1527
        %v1530 = vunpack.c.l.b16 %v1221
        %v1531 = vpack.c.b16 %v1530, %v1530
        %1532 = vrot.lane.b32.xlu0 %v1531, 112
        %v1533 = vpop.permute.xlu0 %1532
        %v1535 = vsel %vm1226, %v1528, 0
        %v1538 = vsel %vm1226, %v1533, 0
        %1540 = vmatpush.bf16.xpose.msra.mxu0 0
        %1541 = vmatpush.bf16.xpose.msra.mxu0 0
        %1542 = vmatpush.bf16.xpose.msra.mxu0 0
        %1543 = vmatpush.bf16.xpose.msra.mxu0 0
        %1544 = vmatpush.bf16.xpose.msra.mxu0 0
        %1545 = vmatpush.bf16.xpose.msra.mxu0 0
        %1546 = vmatpush.bf16.xpose.msra.mxu0 0
        %1547 = vmatpush.bf16.xpose.msra.mxu0 %v1538
        %1548 = vmatmul.bf16.gmra.mxu0 %v1535
        %v1549 = vpop.f32.mrf.mxu0
        %v1550 = vadd.f32 0.0, %v1549
        %v1551 = vpop.f32.mrf.mxu0
        %1552 = vdwg.mxu0
        %v1553 = vmul.f32 %v1463, 0.25
        %v1554 = vmul.f32 %v1492, 0.25
        %v1555 = vmul.f32 %v1521, 0.25
        %v1556 = vmul.f32 %v1550, 0.25
        %v1557 = vadd.f32 %v1553, %v961
        %v1558 = vadd.f32 %v1554, %v962
        %v1559 = vadd.f32 %v1555, %v963
        %v1560 = vadd.f32 %v1556, %v964
        %v1561 = vsel %vm1311, %v1557, -inf
        %1562 = vmax.xlane.f32.xlu0 %v1561
        %v1563 = vpop.xlane.xlu0 %1562
        %v1564 = vsel %vm1311, %v1558, -inf
        %1565 = vmax.xlane.f32.xlu0 %v1564
        %v1566 = vpop.xlane.xlu0 %1565
        %v1567 = vsel %vm1311, %v1559, -inf
        %1568 = vmax.xlane.f32.xlu0 %v1567
        %v1569 = vpop.xlane.xlu0 %1568
        %v1570 = vsel %vm1311, %v1560, -inf
        %1571 = vmax.xlane.f32.xlu0 %v1570
        %v1572 = vpop.xlane.xlu0 %1571
        %v1573 = vsub.f32 %v1557, %v1563
        %v1574 = vsub.f32 %v1558, %v1566
        %v1575 = vsub.f32 %v1559, %v1569
        %v1576 = vsub.f32 %v1560, %v1572
        %v1577 = vmul.f32 %v1573, 1.442695
        %v1578 = vpow.pop %v1577
        %v1579 = vmul.f32 %v1574, 1.442695
        %v1580 = vpow.pop %v1579
        %v1581 = vmul.f32 %v1575, 1.442695
        %v1582 = vpow.pop %v1581
        %v1583 = vmul.f32 %v1576, 1.442695
        %v1584 = vpow.pop %v1583
        %v1585 = vsel %vm1311, %v1578, 0.0
        %1586 = vadd.xlane.f32.xlu0 %v1585
        %v1587 = vpop.xlane.xlu0 %1586
        %v1588 = vsel %vm1311, %v1580, 0.0
        %1589 = vadd.xlane.f32.xlu0 %v1588
        %v1590 = vpop.xlane.xlu0 %1589
        %v1591 = vsel %vm1311, %v1582, 0.0
        %1592 = vadd.xlane.f32.xlu0 %v1591
        %v1593 = vpop.xlane.xlu0 %1592
        %v1594 = vsel %vm1311, %v1584, 0.0
        %1595 = vadd.xlane.f32.xlu0 %v1594
        %v1596 = vpop.xlane.xlu0 %1595
        %v1597 = vrcp.pop %v1587
        %v1598 = vrcp.pop %v1590
        %v1599 = vrcp.pop %v1593
        %v1600 = vrcp.pop %v1596
        %v1601 = vmul.f32 %v1578, %v1597
        %v1602 = vmul.f32 %v1580, %v1598
        %v1603 = vmul.f32 %v1582, %v1599
        %v1604 = vmul.f32 %v1584, %v1600
        %v1605 = vpack.c.bf16 %v1601, %v1601
        %v1606 = vpack.c.bf16 %v1602, %v1602
        %v1607 = vpack.c.bf16 %v1603, %v1603
        %v1608 = vpack.c.bf16 %v1604, %v1604
        %v1610 = vunpack.c.l.b16 %v1222
        %v1611 = vpack.c.b16 %v1610, %v1610
        %1612 = vrot.lane.b32.xlu0 %v1611, 112
        %v1613 = vpop.permute.xlu0 %1612
        %v1615 = vsel %vm1311, %v1605, 0
        %v1618 = vsel %vm1363, %v1613, 0
        %1620 = vmatpush.bf16.msra.mxu0 0
        %1621 = vmatpush.bf16.msra.mxu0 0
        %1622 = vmatpush.bf16.msra.mxu0 0
        %1623 = vmatpush.bf16.msra.mxu0 0
        %1624 = vmatpush.bf16.msra.mxu0 0
        %1625 = vmatpush.bf16.msra.mxu0 0
        %1626 = vmatpush.bf16.msra.mxu0 0
        %1627 = vmatpush.bf16.msra.mxu0 %v1618
        %1628 = vmatmul.bf16.gmra.mxu0 %v1615
        %v1629 = vpop.f32.mrf.mxu0
        %v1630 = vadd.f32 0.0, %v1629
        %v1631 = vpop.f32.mrf.mxu0
        %1632 = vdwg.mxu0
        %v1634 = vunpack.c.l.b16 %v1223
        %v1635 = vpack.c.b16 %v1634, %v1634
        %1636 = vrot.lane.b32.xlu0 %v1635, 112
        %v1637 = vpop.permute.xlu0 %1636
        %v1639 = vsel %vm1311, %v1606, 0
        %v1642 = vsel %vm1363, %v1637, 0
        %1644 = vmatpush.bf16.msra.mxu0 0
        %1645 = vmatpush.bf16.msra.mxu0 0
        %1646 = vmatpush.bf16.msra.mxu0 0
        %1647 = vmatpush.bf16.msra.mxu0 0
        %1648 = vmatpush.bf16.msra.mxu0 0
        %1649 = vmatpush.bf16.msra.mxu0 0
        %1650 = vmatpush.bf16.msra.mxu0 0
        %1651 = vmatpush.bf16.msra.mxu0 %v1642
        %1652 = vmatmul.bf16.gmra.mxu0 %v1639
        %v1653 = vpop.f32.mrf.mxu0
        %v1654 = vadd.f32 0.0, %v1653
        %v1655 = vpop.f32.mrf.mxu0
        %1656 = vdwg.mxu0
        %v1658 = vunpack.c.l.b16 %v1224
        %v1659 = vpack.c.b16 %v1658, %v1658
        %1660 = vrot.lane.b32.xlu0 %v1659, 112
        %v1661 = vpop.permute.xlu0 %1660
        %v1663 = vsel %vm1311, %v1607, 0
        %v1666 = vsel %vm1363, %v1661, 0
        %1668 = vmatpush.bf16.msra.mxu0 0
        %1669 = vmatpush.bf16.msra.mxu0 0
        %1670 = vmatpush.bf16.msra.mxu0 0
        %1671 = vmatpush.bf16.msra.mxu0 0
        %1672 = vmatpush.bf16.msra.mxu0 0
        %1673 = vmatpush.bf16.msra.mxu0 0
        %1674 = vmatpush.bf16.msra.mxu0 0
        %1675 = vmatpush.bf16.msra.mxu0 %v1666
        %1676 = vmatmul.bf16.gmra.mxu0 %v1663
        %v1677 = vpop.f32.mrf.mxu0
        %v1678 = vadd.f32 0.0, %v1677
        %v1679 = vpop.f32.mrf.mxu0
        %1680 = vdwg.mxu0
        %v1682 = vunpack.c.l.b16 %v1225
        %v1683 = vpack.c.b16 %v1682, %v1682
        %1684 = vrot.lane.b32.xlu0 %v1683, 112
        %v1685 = vpop.permute.xlu0 %1684
        %v1687 = vsel %vm1311, %v1608, 0
        %v1690 = vsel %vm1363, %v1685, 0
        %1692 = vmatpush.bf16.msra.mxu0 0
        %1693 = vmatpush.bf16.msra.mxu0 0
        %1694 = vmatpush.bf16.msra.mxu0 0
        %1695 = vmatpush.bf16.msra.mxu0 0
        %1696 = vmatpush.bf16.msra.mxu0 0
        %1697 = vmatpush.bf16.msra.mxu0 0
        %1698 = vmatpush.bf16.msra.mxu0 0
        %1699 = vmatpush.bf16.msra.mxu0 %v1690
        %1700 = vmatmul.bf16.gmra.mxu0 %v1687
        %v1701 = vpop.f32.mrf.mxu0
        %v1702 = vadd.f32 0.0, %v1701
        %v1703 = vpop.f32.mrf.mxu0
        %1704 = vdwg.mxu0
        %1709 = vrot.lane.b32.xlu0 %v1630, 16
        %v1710 = vpop.permute.xlu0 %1709
        %1711 = vrot.lane.b32.xlu0 %v1654, 16
        %v1712 = vpop.permute.xlu0 %1711
        %1713 = vrot.lane.b32.xlu0 %v1678, 16
        %v1714 = vpop.permute.xlu0 %1713
        %1715 = vrot.lane.b32.xlu0 %v1702, 16
        %v1716 = vpop.permute.xlu0 %1715
        %v1721 = vsel %vm1226, %v1377, %v1710
        %v1722 = vsel %vm1226, %v1396, %v1712
        %v1723 = vsel %vm1226, %v1415, %v1714
        %v1724 = vsel %vm1226, %v1434, %v1716
        %v1725 = vpack.c.bf16 %v1722, %v1721
        %v1726 = vpack.c.bf16 %v1724, %v1723
        %v1727 = vld [vmem:[#allocation12] sm:$0xf]
        %v1728 = vld [vmem:[#allocation12 + $0x4] sm:$0xf]
        %v1729 = vld [vmem:[#allocation12 + $0x8] sm:$0xf]
        %v1730 = vld [vmem:[#allocation12 + $0xc] sm:$0xf]
        %v1731 = vld [vmem:[#allocation13] sm:$0x1]
        %v1733 = vperm.slane %v1731, 0
        %v1739 = vunpack.c.l.b16 %v1727
        %v1740 = vunpack.c.l.b16 %v1728
        %v1741 = vunpack.c.l.b16 %v1729
        %v1742 = vunpack.c.l.b16 %v1730
        %v1743 = vpack.c.b16 %v1740, %v1739
        %v1744 = vpack.c.b16 %v1742, %v1741
        %v1748 = vsel %vm977, %v1725, 0
        %v1751 = vsel %vm977, %v1726, 0
        %1753 = vmatpush.bf16.msra.mxu0 0
        %1754 = vmatpush.bf16.msra.mxu0 0
        %1755 = vmatpush.bf16.msra.mxu0 0
        %1756 = vmatpush.bf16.msra.mxu0 0
        %1757 = vmatpush.bf16.msra.mxu0 0
        %1758 = vmatpush.bf16.msra.mxu0 0
        %1759 = vmatpush.bf16.msra.mxu0 %v1744
        %1760 = vmatpush.bf16.msra.mxu0 %v1743
        %1761 = vmatmul.bf16.gmra.mxu0 %v1748
        %v1762 = vpop.f32.mrf.mxu0
        %v1763 = vadd.f32 %v1733, %v1762
        %v1764 = vpop.f32.mrf.mxu0
        %v1765 = vadd.f32 %v1733, %v1764
        %1766 = vmatmul.bf16.gmra.mxu0 %v1751
        %v1767 = vpop.f32.mrf.mxu0
        %v1768 = vadd.f32 %v1733, %v1767
        %v1769 = vpop.f32.mrf.mxu0
        %v1770 = vadd.f32 %v1733, %v1769
        %1771 = vdwg.mxu0
        %v1772 = vadd.f32 %v1085, %v1763
        %v1773 = vadd.f32 %v1086, %v1765
        %v1774 = vadd.f32 %v1087, %v1768
        %v1775 = vadd.f32 %v1088, %v1770
        %v1776 = vsel %vm977, %v1772, 0.0
        %1777 = vadd.xlane.f32.xlu0 %v1776
        %v1778 = vpop.xlane.xlu0 %1777
        %v1779 = vsel %vm977, %v1773, 0.0
        %1780 = vadd.xlane.f32.xlu0 %v1779
        %v1781 = vpop.xlane.xlu0 %1780
        %v1782 = vsel %vm977, %v1774, 0.0
        %1783 = vadd.xlane.f32.xlu0 %v1782
        %v1784 = vpop.xlane.xlu0 %1783
        %v1785 = vsel %vm977, %v1775, 0.0
        %1786 = vadd.xlane.f32.xlu0 %v1785
        %v1787 = vpop.xlane.xlu0 %1786
        %v1788 = vmul.f32 %v1778, %v996
        %v1789 = vmul.f32 %v1781, %v996
        %v1790 = vmul.f32 %v1784, %v996
        %v1791 = vmul.f32 %v1787, %v996
        %v1792 = vsub.f32 %v1772, %v1788
        %v1793 = vsub.f32 %v1773, %v1789
        %v1794 = vsub.f32 %v1774, %v1790
        %v1795 = vsub.f32 %v1775, %v1791
        %v1796 = vmul.f32 %v1792, %v1792
        %v1797 = vmul.f32 %v1793, %v1793
        %v1798 = vmul.f32 %v1794, %v1794
        %v1799 = vmul.f32 %v1795, %v1795
        %v1800 = vsel %vm977, %v1796, 0.0
        %1801 = vadd.xlane.f32.xlu0 %v1800
        %v1802 = vpop.xlane.xlu0 %1801
        %v1803 = vsel %vm977, %v1797, 0.0
        %1804 = vadd.xlane.f32.xlu0 %v1803
        %v1805 = vpop.xlane.xlu0 %1804
        %v1806 = vsel %vm977, %v1798, 0.0
        %1807 = vadd.xlane.f32.xlu0 %v1806
        %v1808 = vpop.xlane.xlu0 %1807
        %v1809 = vsel %vm977, %v1799, 0.0
        %1810 = vadd.xlane.f32.xlu0 %v1809
        %v1811 = vpop.xlane.xlu0 %1810
        %v1812 = vmul.f32 %v1802, %v996
        %v1813 = vmul.f32 %v1805, %v996
        %v1814 = vmul.f32 %v1808, %v996
        %v1815 = vmul.f32 %v1811, %v996
        %v1816 = vadd.f32 %v1812, 1e-12
        %v1817 = vadd.f32 %v1813, 1e-12
        %v1818 = vadd.f32 %v1814, 1e-12
        %v1819 = vadd.f32 %v1815, 1e-12
        %v1820 = vrsqrt.pop %v1816
        %v1821 = vmul.f32 %v1820, %v1816
        %v1822 = vmul.f32 %v1821, %v1820
        %v1823 = vmul.f32 0.5, %v1822
        %v1824 = vsub.f32 1.5, %v1823
        %v1825 = vmul.f32 %v1820, %v1824
        %vm1826 = vweird.f32 %v1816
        %vm1827 = vweird.f32 %v1820
        %vm1828 = vmor %vm1826, %vm1827
        %v1829 = vsel %vm1828, %v1820, %v1825
        %v1830 = vrsqrt.pop %v1817
        %v1831 = vmul.f32 %v1830, %v1817
        %v1832 = vmul.f32 %v1831, %v1830
        %v1833 = vmul.f32 0.5, %v1832
        %v1834 = vsub.f32 1.5, %v1833
        %v1835 = vmul.f32 %v1830, %v1834
        %vm1836 = vweird.f32 %v1817
        %vm1837 = vweird.f32 %v1830
        %vm1838 = vmor %vm1836, %vm1837
        %v1839 = vsel %vm1838, %v1830, %v1835
        %v1840 = vrsqrt.pop %v1818
        %v1841 = vmul.f32 %v1840, %v1818
        %v1842 = vmul.f32 %v1841, %v1840
        %v1843 = vmul.f32 0.5, %v1842
        %v1844 = vsub.f32 1.5, %v1843
        %v1845 = vmul.f32 %v1840, %v1844
        %vm1846 = vweird.f32 %v1818
        %vm1847 = vweird.f32 %v1840
        %vm1848 = vmor %vm1846, %vm1847
        %v1849 = vsel %vm1848, %v1840, %v1845
        %v1850 = vrsqrt.pop %v1819
        %v1851 = vmul.f32 %v1850, %v1819
        %v1852 = vmul.f32 %v1851, %v1850
        %v1853 = vmul.f32 0.5, %v1852
        %v1854 = vsub.f32 1.5, %v1853
        %v1855 = vmul.f32 %v1850, %v1854
        %vm1856 = vweird.f32 %v1819
        %vm1857 = vweird.f32 %v1850
        %vm1858 = vmor %vm1856, %vm1857
        %v1859 = vsel %vm1858, %v1850, %v1855
        %v1860 = vmul.f32 %v1792, %v1829
        %v1861 = vmul.f32 %v1793, %v1839
        %v1862 = vmul.f32 %v1794, %v1849
        %v1863 = vmul.f32 %v1795, %v1859
        %v1864 = vld [vmem:[#allocation15] sm:$0x1]
        %v1866 = vperm.slane %v1864, 0
        %v1868 = vmul.f32 %v1860, %v1866
        %v1869 = vmul.f32 %v1861, %v1866
        %v1870 = vmul.f32 %v1862, %v1866
        %v1871 = vmul.f32 %v1863, %v1866
        %v1872 = vld [vmem:[#allocation16] sm:$0x1]
        %v1874 = vperm.slane %v1872, 0
        %v1876 = vadd.f32 %v1868, %v1874
        %v1877 = vadd.f32 %v1869, %v1874
        %v1878 = vadd.f32 %v1870, %v1874
        %v1879 = vadd.f32 %v1871, %v1874
        %v1880 = vpack.c.bf16 %v1877, %v1876
        %v1881 = vpack.c.bf16 %v1879, %v1878
        %v1882 = vld [vmem:[#allocation18] sm:$0xf]
        %v1883 = vld [vmem:[#allocation18 + $0x4] sm:$0xf]
        %v1884 = vld [vmem:[#allocation18 + $0x8] sm:$0xf]
        %v1885 = vld [vmem:[#allocation18 + $0xc] sm:$0xf]
        %v1886 = vld [vmem:[#allocation19] sm:$0x1]
        %v1888 = vperm.slane %v1886, 0
        %v1894 = vunpack.c.l.b16 %v1882
        %v1895 = vunpack.c.l.b16 %v1883
        %v1896 = vunpack.c.l.b16 %v1884
        %v1897 = vunpack.c.l.b16 %v1885
        %v1898 = vpack.c.b16 %v1895, %v1894
        %v1899 = vpack.c.b16 %v1897, %v1896
        %v1903 = vsel %vm977, %v1880, 0
        %v1906 = vsel %vm977, %v1881, 0
        %1908 = vmatpush.bf16.msra.mxu0 0
        %1909 = vmatpush.bf16.msra.mxu0 0
        %1910 = vmatpush.bf16.msra.mxu0 0
        %1911 = vmatpush.bf16.msra.mxu0 0
        %1912 = vmatpush.bf16.msra.mxu0 0
        %1913 = vmatpush.bf16.msra.mxu0 0
        %1914 = vmatpush.bf16.msra.mxu0 %v1899
        %1915 = vmatpush.bf16.msra.mxu0 %v1898
        %1916 = vmatmul.bf16.gmra.mxu0 %v1903
        %v1917 = vpop.f32.mrf.mxu0
        %v1918 = vadd.f32 %v1888, %v1917
        %v1919 = vpop.f32.mrf.mxu0
        %v1920 = vadd.f32 %v1888, %v1919
        %1921 = vmatmul.bf16.gmra.mxu0 %v1906
        %v1922 = vpop.f32.mrf.mxu0
        %v1923 = vadd.f32 %v1888, %v1922
        %v1924 = vpop.f32.mrf.mxu0
        %v1925 = vadd.f32 %v1888, %v1924
        %1926 = vdwg.mxu0
        %v1927 = vmul.f32 %v1918, 0.5
        %v1928 = vmul.f32 %v1920, 0.5
        %v1929 = vmul.f32 %v1923, 0.5
        %v1930 = vmul.f32 %v1925, 0.5
        %v1931 = vmul.f32 %v1918, 0.044715
        %v1932 = vmul.f32 %v1920, 0.044715
        %v1933 = vmul.f32 %v1923, 0.044715
        %v1934 = vmul.f32 %v1925, 0.044715
        %v1935 = vmul.f32 %v1931, %v1918
        %v1936 = vmul.f32 %v1932, %v1920
        %v1937 = vmul.f32 %v1933, %v1923
        %v1938 = vmul.f32 %v1934, %v1925
        %v1939 = vmul.f32 %v1935, %v1918
        %v1940 = vmul.f32 %v1936, %v1920
        %v1941 = vmul.f32 %v1937, %v1923
        %v1942 = vmul.f32 %v1938, %v1925
        %v1943 = vadd.f32 %v1918, %v1939
        %v1944 = vadd.f32 %v1920, %v1940
        %v1945 = vadd.f32 %v1923, %v1941
        %v1946 = vadd.f32 %v1925, %v1942
        %v1947 = vmul.f32 %v1943, 0.7978846
        %v1948 = vmul.f32 %v1944, 0.7978846
        %v1949 = vmul.f32 %v1945, 0.7978846
        %v1950 = vmul.f32 %v1946, 0.7978846
        %v1951 = vtanh.pop %v1947
        %v1952 = vtanh.pop %v1948
        %v1953 = vtanh.pop %v1949
        %v1954 = vtanh.pop %v1950
        %v1955 = vadd.f32 %v1951, 1.0
        %v1956 = vadd.f32 %v1952, 1.0
        %v1957 = vadd.f32 %v1953, 1.0
        %v1958 = vadd.f32 %v1954, 1.0
        %v1959 = vmul.f32 %v1927, %v1955
        %v1960 = vmul.f32 %v1928, %v1956
        %v1961 = vmul.f32 %v1929, %v1957
        %v1962 = vmul.f32 %v1930, %v1958
        %v1963 = vpack.c.bf16 %v1960, %v1959
        %v1964 = vpack.c.bf16 %v1962, %v1961
        %v1965 = vld [vmem:[%s16] sm:$0xf]
        %v1966 = vld [vmem:[%s16 + $0x4] sm:$0xf]
        %v1967 = vld [vmem:[%s16 + $0x8] sm:$0xf]
        %v1968 = vld [vmem:[%s16 + $0xc] sm:$0xf]
        %v1969 = vld [vmem:[%s16 + $0x10] sm:$0xf]
        %v1970 = vld [vmem:[%s16 + $0x14] sm:$0xf]
        %v1971 = vld [vmem:[%s16 + $0x18] sm:$0xf]
        %v1972 = vld [vmem:[%s16 + $0x1c] sm:$0xf]
        %v1973 = vld [vmem:[%s16 + $0x20] sm:$0xf]
        %v1974 = vld [vmem:[%s16 + $0x24] sm:$0xf]
        %v1975 = vld [vmem:[%s16 + $0x28] sm:$0xf]
        %v1976 = vld [vmem:[%s16 + $0x2c] sm:$0xf]
        %v1977 = vld [vmem:[%s16 + $0x30] sm:$0xf]
        %v1978 = vld [vmem:[%s16 + $0x34] sm:$0xf]
        %v1979 = vld [vmem:[%s16 + $0x38] sm:$0xf]
        %v1980 = vld [vmem:[%s16 + $0x3c] sm:$0xf]
        %v1981 = vld [vmem:[#allocation21] sm:$0x1]
        %v1983 = vperm.slane %v1981, 0
        %v2001 = vunpack.c.l.b16 %v1965
        %v2002 = vunpack.c.l.b16 %v1966
        %v2003 = vunpack.c.l.b16 %v1967
        %v2004 = vunpack.c.l.b16 %v1968
        %v2005 = vunpack.c.l.b16 %v1969
        %v2006 = vunpack.c.l.b16 %v1970
        %v2007 = vunpack.c.l.b16 %v1971
        %v2008 = vunpack.c.l.b16 %v1972
        %v2009 = vunpack.c.l.b16 %v1973
        %v2010 = vunpack.c.l.b16 %v1974
        %v2011 = vunpack.c.l.b16 %v1975
        %v2012 = vunpack.c.l.b16 %v1976
        %v2013 = vunpack.c.l.b16 %v1977
        %v2014 = vunpack.c.l.b16 %v1978
        %v2015 = vunpack.c.l.b16 %v1979
        %v2016 = vunpack.c.l.b16 %v1980
        %v2017 = vpack.c.b16 %v2002, %v2001
        %v2018 = vpack.c.b16 %v2004, %v2003
        %v2019 = vpack.c.b16 %v2006, %v2005
        %v2020 = vpack.c.b16 %v2008, %v2007
        %v2021 = vpack.c.b16 %v2010, %v2009
        %v2022 = vpack.c.b16 %v2012, %v2011
        %v2023 = vpack.c.b16 %v2014, %v2013
        %v2024 = vpack.c.b16 %v2016, %v2015
        %2033 = vmatpush.bf16.msra.mxu0 %v2024
        %2034 = vmatpush.bf16.msra.mxu0 %v2023
        %2035 = vmatpush.bf16.msra.mxu0 %v2022
        %2036 = vmatpush.bf16.msra.mxu0 %v2021
        %2037 = vmatpush.bf16.msra.mxu0 %v2020
        %2038 = vmatpush.bf16.msra.mxu0 %v2019
        %2039 = vmatpush.bf16.msra.mxu0 %v2018
        %2040 = vmatpush.bf16.msra.mxu0 %v2017
        %2041 = vmatmul.bf16.gmra.mxu0 %v1963
        %v2042 = vpop.f32.mrf.mxu0
        %v2043 = vadd.f32 %v1983, %v2042
        %v2044 = vpop.f32.mrf.mxu0
        %v2045 = vadd.f32 %v1983, %v2044
        %2046 = vmatmul.bf16.gmra.mxu0 %v1964
        %v2047 = vpop.f32.mrf.mxu0
        %v2048 = vadd.f32 %v1983, %v2047
        %v2049 = vpop.f32.mrf.mxu0
        %v2050 = vadd.f32 %v1983, %v2049
        %2051 = vdwg.mxu0
        %v2052 = vadd.f32 %v1876, %v2043
        %v2053 = vadd.f32 %v1877, %v2045
        %v2054 = vadd.f32 %v1878, %v2048
        %v2055 = vadd.f32 %v1879, %v2050
        %v2056 = vsel %vm977, %v2052, 0.0
        %2057 = vadd.xlane.f32.xlu0 %v2056
        %v2058 = vpop.xlane.xlu0 %2057
        %v2059 = vsel %vm977, %v2053, 0.0
        %2060 = vadd.xlane.f32.xlu0 %v2059
        %v2061 = vpop.xlane.xlu0 %2060
        %v2062 = vsel %vm977, %v2054, 0.0
        %2063 = vadd.xlane.f32.xlu0 %v2062
        %v2064 = vpop.xlane.xlu0 %2063
        %v2065 = vsel %vm977, %v2055, 0.0
        %2066 = vadd.xlane.f32.xlu0 %v2065
        %v2067 = vpop.xlane.xlu0 %2066
        %v2068 = vmul.f32 %v2058, %v996
        %v2069 = vmul.f32 %v2061, %v996
        %v2070 = vmul.f32 %v2064, %v996
        %v2071 = vmul.f32 %v2067, %v996
        %v2072 = vsub.f32 %v2052, %v2068
        %v2073 = vsub.f32 %v2053, %v2069
        %v2074 = vsub.f32 %v2054, %v2070
        %v2075 = vsub.f32 %v2055, %v2071
        %v2076 = vmul.f32 %v2072, %v2072
        %v2077 = vmul.f32 %v2073, %v2073
        %v2078 = vmul.f32 %v2074, %v2074
        %v2079 = vmul.f32 %v2075, %v2075
        %v2080 = vsel %vm977, %v2076, 0.0
        %2081 = vadd.xlane.f32.xlu0 %v2080
        %v2082 = vpop.xlane.xlu0 %2081
        %v2083 = vsel %vm977, %v2077, 0.0
        %2084 = vadd.xlane.f32.xlu0 %v2083
        %v2085 = vpop.xlane.xlu0 %2084
        %v2086 = vsel %vm977, %v2078, 0.0
        %2087 = vadd.xlane.f32.xlu0 %v2086
        %v2088 = vpop.xlane.xlu0 %2087
        %v2089 = vsel %vm977, %v2079, 0.0
        %2090 = vadd.xlane.f32.xlu0 %v2089
        %v2091 = vpop.xlane.xlu0 %2090
        %v2092 = vmul.f32 %v2082, %v996
        %v2093 = vmul.f32 %v2085, %v996
        %v2094 = vmul.f32 %v2088, %v996
        %v2095 = vmul.f32 %v2091, %v996
        %v2096 = vadd.f32 %v2092, 1e-12
        %v2097 = vadd.f32 %v2093, 1e-12
        %v2098 = vadd.f32 %v2094, 1e-12
        %v2099 = vadd.f32 %v2095, 1e-12
        %v2100 = vrsqrt.pop %v2096
        %v2101 = vmul.f32 %v2100, %v2096
        %v2102 = vmul.f32 %v2101, %v2100
        %v2103 = vmul.f32 0.5, %v2102
        %v2104 = vsub.f32 1.5, %v2103
        %v2105 = vmul.f32 %v2100, %v2104
        %vm2106 = vweird.f32 %v2096
        %vm2107 = vweird.f32 %v2100
        %vm2108 = vmor %vm2106, %vm2107
        %v2109 = vsel %vm2108, %v2100, %v2105
        %v2110 = vrsqrt.pop %v2097
        %v2111 = vmul.f32 %v2110, %v2097
        %v2112 = vmul.f32 %v2111, %v2110
        %v2113 = vmul.f32 0.5, %v2112
        %v2114 = vsub.f32 1.5, %v2113
        %v2115 = vmul.f32 %v2110, %v2114
        %vm2116 = vweird.f32 %v2097
        %vm2117 = vweird.f32 %v2110
        %vm2118 = vmor %vm2116, %vm2117
        %v2119 = vsel %vm2118, %v2110, %v2115
        %v2120 = vrsqrt.pop %v2098
        %v2121 = vmul.f32 %v2120, %v2098
        %v2122 = vmul.f32 %v2121, %v2120
        %v2123 = vmul.f32 0.5, %v2122
        %v2124 = vsub.f32 1.5, %v2123
        %v2125 = vmul.f32 %v2120, %v2124
        %vm2126 = vweird.f32 %v2098
        %vm2127 = vweird.f32 %v2120
        %vm2128 = vmor %vm2126, %vm2127
        %v2129 = vsel %vm2128, %v2120, %v2125
        %v2130 = vrsqrt.pop %v2099
        %v2131 = vmul.f32 %v2130, %v2099
        %v2132 = vmul.f32 %v2131, %v2130
        %v2133 = vmul.f32 0.5, %v2132
        %v2134 = vsub.f32 1.5, %v2133
        %v2135 = vmul.f32 %v2130, %v2134
        %vm2136 = vweird.f32 %v2099
        %vm2137 = vweird.f32 %v2130
        %vm2138 = vmor %vm2136, %vm2137
        %v2139 = vsel %vm2138, %v2130, %v2135
        %v2140 = vmul.f32 %v2072, %v2109
        %v2141 = vmul.f32 %v2073, %v2119
        %v2142 = vmul.f32 %v2074, %v2129
        %v2143 = vmul.f32 %v2075, %v2139
        %v2144 = vld [vmem:[#allocation22] sm:$0x1]
        %v2146 = vperm.slane %v2144, 0
        %v2148 = vmul.f32 %v2140, %v2146
        %v2149 = vmul.f32 %v2141, %v2146
        %v2150 = vmul.f32 %v2142, %v2146
        %v2151 = vmul.f32 %v2143, %v2146
        %v2152 = vld [vmem:[#allocation24] sm:$0x1]
        %v2154 = vperm.slane %v2152, 0
        %v2156 = vadd.f32 %v2148, %v2154
        %v2157 = vadd.f32 %v2149, %v2154
        %v2158 = vadd.f32 %v2150, %v2154
        %v2159 = vadd.f32 %v2151, %v2154
        %v2160 = vpack.c.bf16 %v2156, %v2156
        %v2161 = vpack.c.bf16 %v2157, %v2157
        %v2162 = vpack.c.bf16 %v2158, %v2158
        %v2163 = vpack.c.bf16 %v2159, %v2159
        %v2164 = vld [vmem:[%s20] sm:$0xf]
        %v2165 = vld [vmem:[%s20 + $0x4] sm:$0xf]
        %v2166 = vld [vmem:[%s20 + $0x8] sm:$0xf]
        %v2167 = vld [vmem:[%s20 + $0xc] sm:$0xf]
        %v2168 = vld [vmem:[%s21] sm:$0x1]
        %v2170 = vperm.slane %v2168, 0
        %v2176 = vunpack.c.l.b16 %v2160
        %v2177 = vunpack.c.l.b16 %v2161
        %v2178 = vunpack.c.l.b16 %v2162
        %v2179 = vunpack.c.l.b16 %v2163
        %v2180 = vrot.slane %v2177, 7
        %vm2181 = vcmask 1041409
        %v2182 = vsel %vm2181, %v2180, %v2176
        %v2183 = vrot.slane %v2178, 6
        %vm2184 = vcmask 1042434
        %v2185 = vsel %vm2184, %v2183, %v2182
        %v2186 = vrot.slane %v2179, 5
        %vm2187 = vcmask 1043459
        %v2188 = vsel %vm2187, %v2186, %v2185
        %v2189 = vpack.c.b16 %v2188, %v2188
        %v2194 = vunpack.c.l.b16 %v2164
        %v2195 = vunpack.c.l.b16 %v2165
        %v2196 = vunpack.c.l.b16 %v2166
        %v2197 = vunpack.c.l.b16 %v2167
        %v2198 = vpack.c.b16 %v2195, %v2194
        %v2199 = vpack.c.b16 %v2197, %v2196
        %v2203 = vsel %vm977, %v2189, 0
        %2205 = vmatpush.bf16.msra.mxu0 0
        %2206 = vmatpush.bf16.msra.mxu0 0
        %2207 = vmatpush.bf16.msra.mxu0 0
        %2208 = vmatpush.bf16.msra.mxu0 0
        %2209 = vmatpush.bf16.msra.mxu0 0
        %2210 = vmatpush.bf16.msra.mxu0 0
        %2211 = vmatpush.bf16.msra.mxu0 %v2199
        %2212 = vmatpush.bf16.msra.mxu0 %v2198
        %2213 = vmatmul.bf16.gmra.mxu0 %v2203
        %v2214 = vpop.f32.mrf.mxu0
        %v2215 = vadd.f32 %v2170, %v2214
        %v2216 = vpop.f32.mrf.mxu0
        %2217 = vdwg.mxu0
        %v2218 = vtanh.pop %v2215
        %v2219 = vstv %s936
        %v2220 = vadd.s32 %v932, %v2219
        %v2221 = vmul.u32 %v2220, 7919
        %v2222 = vadd.s32 %v2221, %v934
        %v2223 = vshra.s32 %v2222, 16
        %v2224 = vxor.u32 %v2222, %v2223
        %v2225 = vmul.u32 %v2224, 73244475
        %v2226 = vshra.s32 %v2225, 16
        %v2227 = vxor.u32 %v2225, %v2226
        %v2228 = vmul.u32 %v2227, 73244475
        %v2229 = vshra.s32 %v2228, 16
        %v2230 = vxor.u32 %v2228, %v2229
        %v2231 = vand.u32 %v2230, 8388607
        %v2232 = vcvt.s32.f32 %v2231
        %v2233 = vmul.f32 %v2232, 1.1920929e-07
        %vm2234 = vcmp.ge.f32.partialorder %v2233, 0.1
        %v2235 = vsel %vm2234, 1, 0
        %v2236 = vcvt.s32.f32 %v2235
        %v2237 = vmul.f32 %v2218, %v2236
        %v2238 = vmul.f32 %v2237, 1.1111112
        %v2239 = vpack.c.bf16 %v2238, %v2238
        %v2240 = vld [vmem:[#allocation25] sm:$0xf]
        %v2241 = vld [vmem:[#allocation25 + $0x4] sm:$0xf]
        %v2242 = vld [vmem:[#allocation25 + $0x8] sm:$0xf]
        %v2243 = vld [vmem:[#allocation25 + $0xc] sm:$0xf]
        %v2244 = vld [vmem:[%s23] sm:$0x1]
        %v2246 = vperm.slane %v2244, 0
        %v2252 = vunpack.c.l.b16 %v2240
        %v2253 = vunpack.c.l.b16 %v2241
        %v2254 = vunpack.c.l.b16 %v2242
        %v2255 = vunpack.c.l.b16 %v2243
        %v2256 = vpack.c.b16 %v2253, %v2252
        %v2257 = vpack.c.b16 %v2255, %v2254
        %v2261 = vsel %vm977, %v2239, 0
        %2263 = vmatpush.bf16.msra.mxu0 0
        %2264 = vmatpush.bf16.msra.mxu0 0
        %2265 = vmatpush.bf16.msra.mxu0 0
        %2266 = vmatpush.bf16.msra.mxu0 0
        %2267 = vmatpush.bf16.msra.mxu0 0
        %2268 = vmatpush.bf16.msra.mxu0 0
        %2269 = vmatpush.bf16.msra.mxu0 %v2257
        %2270 = vmatpush.bf16.msra.mxu0 %v2256
        %2271 = vmatmul.bf16.gmra.mxu0 %v2261
        %v2272 = vpop.f32.mrf.mxu0
        %v2273 = vadd.f32 %v2246, %v2272
        %v2274 = vpop.f32.mrf.mxu0
        %2275 = vdwg.mxu0
        %2276 = vst [vmem:[%s923] sm:$0xf] %v2273
        %s2277 = sand.u32 %s550, 1
        %s2278 = scalar_lea.sflag [#allocation6], %s2277
        %s2279 = sand.u32 %s550, 1
        %s2280 = smul.addr %s2279, 4
        %s2281 = scalar_lea.vmem [#allocation27], %s2280
        // Predicated region
        $region169: #{tpu_custom_call.1} parent=111 // pred_check
          %p2282 = pneg %p560
        $region170: #{tpu_custom_call.1} parent=111 // pred_check_branch
          %2284 = sbr.rel (%p2282) target = $region172
        $region171: #{tpu_custom_call.1} parent=111 // pred_region
          %2286 = vsyncadd %s2278, 0
          %s2287 = smul.addr %s54, 4
          %s2288 = scalar_lea.hbm %s24, %s2287
          %s2290 = sshll.u32 %s2281, 4
          %s2291 = int_to_ptr.vmem [resolvable:$true] %s2290
          %s2292 = sshll.u32 %s2288, 4
          %s2293 = int_to_ptr.hbm [resolvable:$true] %s2292
          %2295 = dma.vmem_to_hbm [thread:$0]  %s2291, 64, %s2293, %s2278
        $region172: #{tpu_custom_call.1} parent=111 // pred_fallthru
          _
      $region112: #{tpu_custom_call.1} parent=5 // pred_fallthru
        _
      %p2296 = scmp.le.s32.totalorder 2, %s49
      // Predicated region
      $region173: #{tpu_custom_call.1} parent=5 // pred_check
        %p2297 = pneg %p2296
      $region174: #{tpu_custom_call.1} parent=5 // pred_check_branch
        %2299 = sbr.rel (%p2297) target = $region176
      $region175: #{tpu_custom_call.1} parent=5 // pred_region
        %s2300 = ssub.s32 %s49, 2
        // Predicated region
        $region177: #{tpu_custom_call.1} parent=175 // pred_check
          %p2301 = pneg %p566
        $region178: #{tpu_custom_call.1} parent=175 // pred_check_branch
          %2303 = sbr.rel (%p2301) target = $region180
        $region179: #{tpu_custom_call.1} parent=175 // pred_region
          %s2304 = sand.u32 %s551, 1
          %s2305 = scalar_lea.sflag [#allocation6], %s2304
          %s2306 = sand.u32 %s551, 1
          %s2307 = smul.addr %s2306, 4
          %s2308 = scalar_lea.vmem [#allocation27], %s2307
          %2310 = dma.done %s2305, 64
        $region180: #{tpu_custom_call.1} parent=175 // pred_fallthru
          _
      $region176: #{tpu_custom_call.1} parent=5 // pred_fallthru
        _
    $region6: #{tpu_custom_call.1} parent=1 // loop_footer
      %s53 = sadd.s32 1, %s49
    $region7: #{tpu_custom_call.1} parent=1 // loop_footer_branch
      %48 = sbr.rel target = $region3
    $region8: #{tpu_custom_call.1} parent=1 // loop_exit
      _
    %2311 = vsyncpa [#allocation5], 1
    %s2312 = scalar_lea.sflag [#allocation5], 1
    %2313 = vsyncpa %s2312, 1
    %2314 = vsyncpa [#allocation8], 1
    %2315 = vsyncpa [#allocation11], 1
    %2316 = vsyncpa [#allocation14], 1
    %2317 = vsyncpa [#allocation17], 1
    %2318 = vsyncpa [#allocation20], 1
    %2319 = vsyncpa [#allocation23], 1
    %2320 = vsyncpa [#allocation26], 1
    %2321 = vsyncpa [#allocation6], 1
    %s2322 = scalar_lea.sflag [#allocation6], 1
    %2323 = vsyncpa %s2322, 1

</llo_original>
